<compile_context>
chip_gen: v7x
topology: tpu7x:2x2x1
jax: 0.10.0
libtpu: 0.0.40
codegen_flags: <defaults>
</compile_context>

<pallas_src>
import functools
import math

import jax
import jax.numpy as jnp
from jax.experimental import pallas as pl
from jax.experimental.pallas import tpu as pltpu  # noqa: F401  (kept for TPU-specific tuning)

LANE = 128


def _pad_axis(x, axis, target):
    pad = target - x.shape[axis]
    if pad <= 0:
        return x
    widths = [(0, 0)] * x.ndim
    widths[axis] = (0, pad)
    return jnp.pad(x, widths)


# ----------------------------------------------------------------------------
# Kernel 1: fused  Y = relu(A @ W + b)   (conv1 as im2col matmul)
#   A: (M, K) bf16   W: (K, 128) bf16 (out-channels zero-padded)   b: (1, 128) f32
#   Y: (M, 128) bf16  -- lane-dense store
# ----------------------------------------------------------------------------
def _conv_mm_kernel(a_ref, w_ref, b_ref, o_ref):
    y = jnp.dot(a_ref[...], w_ref[...], preferred_element_type=jnp.float32)
    y = jnp.maximum(y + b_ref[...], 0.0)
    o_ref[...] = y.astype(o_ref.dtype)


def conv_mm_relu(a, w, b):
    M, K = a.shape
    K2, N = w.shape
    assert K == K2 and N % LANE == 0 and M % 8 == 0
    return pl.pallas_call(
        _conv_mm_kernel,
        out_shape=jax.ShapeDtypeStruct((M, N), jnp.bfloat16),
        in_specs=[
            pl.BlockSpec((M, K), lambda: (0, 0)),
            pl.BlockSpec((K, N), lambda: (0, 0)),
            pl.BlockSpec((1, N), lambda: (0, 0)),
        ],
        out_specs=pl.BlockSpec((M, N), lambda: (0, 0)),
    )(a, w, b)


# ----------------------------------------------------------------------------
# Kernel 2: fused conv2 (im2col matmul) + ReLU + flatten + fc1 + ReLU
#           + fc2 + softmax.  Everything lives in registers/VMEM.
#   a2:   (n_pos*B, 512) bf16   rows ordered (spatial-position-major, batch-minor)
#   w2:   (512, 128) bf16       conv2 out-channels zero-padded 64 -> 128
#   wfc1: (n_pos, 128, 512) bf16  fc1 weight pre-permuted so the per-batch
#                                flatten becomes a sum over spatial positions
#   wfc2: (512, 128) bf16       action columns zero-padded 4 -> 128
#   out:  (B, 128) f32          valid action columns sliced outside
# ----------------------------------------------------------------------------
def _head_kernel(a2_ref, w2_ref, b2_ref, wfc1_ref, bfc1_ref, wfc2_ref, bfc2_ref,
                 o_ref, *, batch, n_pos, action_space):
    # conv2 + ReLU  (f32 accumulation)
    y2 = jnp.dot(a2_ref[...], w2_ref[...], preferred_element_type=jnp.float32)
    y2 = jnp.maximum(y2 + b2_ref[...], 0.0)                 # (n_pos*B, 128)

    # flatten + fc1: rows are position-major so per-batch flatten is a sum of
    # n_pos small matmuls against pre-permuted fc1 weight blocks.
    hid = bfc1_ref.shape[-1]
    h = jnp.zeros((batch, hid), jnp.float32)
    for p in range(n_pos):                                   # static unroll (n_pos = 4)
        blk = y2[p * batch:(p + 1) * batch, :].astype(jnp.bfloat16)
        h = h + jnp.dot(blk, wfc1_ref[p], preferred_element_type=jnp.float32)
    h = jnp.maximum(h + bfc1_ref[...], 0.0).astype(jnp.bfloat16)   # (B, 512)

    # fc2 + softmax over the valid action columns (the rest are lane padding)
    logits = jnp.dot(h, wfc2_ref[...], preferred_element_type=jnp.float32)
    logits = logits + bfc2_ref[...]
    col = jax.lax.broadcasted_iota(jnp.int32, logits.shape, 1)
    logits = jnp.where(col < action_space, logits, -1e30)
    m = jnp.max(logits, axis=-1, keepdims=True)
    e = jnp.exp(logits - m)
    denom = jnp.sum(e, axis=-1, keepdims=True)
    o_ref[...] = (e * pl.reciprocal(denom, approx=True)).astype(o_ref.dtype)


def head_forward(a2, w2, b2, wfc1, bfc1, wfc2, bfc2, *, batch, n_pos, action_space):
    MP, K2 = a2.shape
    _, N2 = w2.shape
    P, C2P, HID = wfc1.shape
    _, NA = wfc2.shape
    kernel = functools.partial(_head_kernel, batch=batch, n_pos=n_pos,
                               action_space=action_space)
    return pl.pallas_call(
        kernel,
        out_shape=jax.ShapeDtypeStruct((batch, NA), jnp.float32),
        in_specs=[
            pl.BlockSpec((MP, K2), lambda: (0, 0)),
            pl.BlockSpec((K2, N2), lambda: (0, 0)),
            pl.BlockSpec((1, N2), lambda: (0, 0)),
            pl.BlockSpec((P, C2P, HID), lambda: (0, 0, 0)),
            pl.BlockSpec((1, HID), lambda: (0, 0)),
            pl.BlockSpec((HID, NA), lambda: (0, 0)),
            pl.BlockSpec((1, NA), lambda: (0, 0)),
        ],
        out_specs=pl.BlockSpec((batch, NA), lambda: (0, 0)),
    )(a2, w2, b2, wfc1, bfc1, wfc2, bfc2)


# ----------------------------------------------------------------------------
# im2col glue (plain JAX, fuses with surrounding XLA ops)
# ----------------------------------------------------------------------------
def im2col_nchw(x, kernel_size, stride):
    """NCHW -> (B*Ho*Wo, C*K*K); column order (c, kh, kw) matches
    PyTorch conv weight.reshape(O, C*K*K)."""
    B, C, H, W = x.shape
    K, S = kernel_size, stride
    Ho = (H - K) // S + 1
    Wo = (W - K) // S + 1
    cols = []
    for ki in range(K):
        for kj in range(K):
            cols.append(x[:, :, ki:ki + Ho * S:S, kj:kj + Wo * S:S])  # (B,C,Ho,Wo)
    p = jnp.stack(cols, axis=2)                 # (B, C, K*K, Ho, Wo)
    p = p.reshape(B, C * K * K, Ho, Wo)
    p = p.transpose(0, 2, 3, 1)                 # (B, Ho, Wo, C*K*K)
    return p.reshape(B * Ho * Wo, C * K * K), Ho, Wo


def im2col_nhwc_posmajor(y, kernel_size, stride):
    """NHWC -> (Ho*Wo*B, C*K*K) with rows ordered (out-position-major,
    batch-minor); column order (c, kh, kw)."""
    B, H, W, C = y.shape
    K, S = kernel_size, stride
    Ho = (H - K) // S + 1
    Wo = (W - K) // S + 1
    cols = []
    for ki in range(K):
        for kj in range(K):
            cols.append(y[:, ki:ki + Ho * S:S, kj:kj + Wo * S:S, :])  # (B,Ho,Wo,C)
    p = jnp.stack(cols, axis=-1)                # (B, Ho, Wo, C, K*K)
    p = p.reshape(B, Ho, Wo, C * K * K)         # col index = c*K*K + ki*K + kj
    p = p.transpose(1, 2, 0, 3)                 # (Ho, Wo, B, C*K*K) -> rows (p, b)
    return p.reshape(Ho * Wo * B, C * K * K), Ho, Wo


# ----------------------------------------------------------------------------
# Parameter construction (PyTorch-equivalent init) + one-time kernel-layout prep
# ----------------------------------------------------------------------------
def init_params(key, action_space, frame_height, frame_width, k_frames):
    k1, k2, k3, k4, k5, k6 = jax.random.split(key, 6)

    def conv_init(key, shape):
        fan_in = shape[1] * shape[2] * shape[3]
        bound = 1.0 / math.sqrt(fan_in)
        return jax.random.uniform(key, shape, jnp.float32, -bound, bound)

    conv1_w = conv_init(k1, (32, k_frames, 8, 8))
    conv1_b = jax.random.uniform(k2, (32,), jnp.float32,
                                 -1.0 / math.sqrt(k_frames * 64),
                                 1.0 / math.sqrt(k_frames * 64))
    conv2_w = conv_init(k3, (64, 32, 4, 4))
    conv2_b = jax.random.uniform(k4, (64,), jnp.float32,
                                 -1.0 / math.sqrt(32 * 16),
                                 1.0 / math.sqrt(32 * 16))

    h1 = (frame_height - 8) // 4 + 1
    w1 = (frame_width - 8) // 4 + 1
    h2 = (h1 - 4) // 2 + 1
    w2 = (w1 - 4) // 2 + 1
    fc1_in = 64 * h2 * w2

    def xavier(key, fan_in, fan_out):
        a = math.sqrt(6.0 / (fan_in + fan_out))
        return jax.random.uniform(key, (fan_out, fan_in), jnp.float32, -a, a)

    fc1_w = xavier(k5, fc1_in, 512)
    fc1_b = jnp.full((512,), 0.01, jnp.float32)
    fc2_w = xavier(k6, 512, action_space)
    fc2_b = jnp.full((action_space,), 0.01, jnp.float32)

    return dict(conv1_w=conv1_w, conv1_b=conv1_b,
                conv2_w=conv2_w, conv2_b=conv2_b,
                fc1_w=fc1_w, fc1_b=fc1_b,
                fc2_w=fc2_w, fc2_b=fc2_b)


def prepare_params(params, *, n_pos):
    """One-time weight permutation / lane padding / bf16 cast for the kernels."""
    co1 = params["conv1_w"].shape[0]          # 32
    co2 = params["conv2_w"].shape[0]          # 64
    hid = params["fc1_w"].shape[0]            # 512

    w1 = _pad_axis(params["conv1_w"].reshape(co1, -1).T, 1, LANE).astype(jnp.bfloat16)
    b1 = _pad_axis(params["conv1_b"].reshape(1, -1), 1, LANE).astype(jnp.float32)

    w2 = _pad_axis(params["conv2_w"].reshape(co2, -1).T, 1, LANE).astype(jnp.bfloat16)
    b2 = _pad_axis(params["conv2_b"].reshape(1, -1), 1, LANE).astype(jnp.float32)

    # fc1: PyTorch flatten order is (c, oh, ow) = c*n_pos + p.  Re-block to
    # (p, c, n) so the kernel consumes channel-last conv2 output directly,
    # and pad the channel axis to the lane-padded conv2 width.
    fc1 = params["fc1_w"].T.reshape(co2, n_pos, hid).transpose(1, 0, 2)  # (n_pos,64,512)
    fc1 = _pad_axis(fc1, 1, LANE).astype(jnp.bfloat16)                   # (n_pos,128,512)
    bfc1 = params["fc1_b"].reshape(1, -1).astype(jnp.float32)

    wfc2 = _pad_axis(params["fc2_w"].T, 1, LANE).astype(jnp.bfloat16)    # (512, 128)
    bfc2 = _pad_axis(params["fc2_b"].reshape(1, -1), 1, LANE).astype(jnp.float32)

    return dict(w1=w1, b1=b1, w2=w2, b2=b2,
                wfc1=fc1, bfc1=bfc1, wfc2=wfc2, bfc2=bfc2)


# ----------------------------------------------------------------------------
# DQN forward (2 fused Pallas kernels + thin im2col glue)
# ----------------------------------------------------------------------------
def dqn_forward(kp, x, *, action_space, conv1_out=32):
    x = x.astype(jnp.float32)
    B = x.shape[0]

    # conv1 (k=8, s=4) + ReLU : im2col + fused Pallas matmul, output stays
    # channel-last (lane-padded to 128); no NCHW transpose on activations.
    a1, h1, w1 = im2col_nchw(x, kernel_size=8, stride=4)
    m1 = a1.shape[0]
    m1p = -(-m1 // 8) * 8                      # pad M to a multiple of 8
    a1 = _pad_axis(a1, 0, m1p).astype(jnp.bfloat16)
    y1 = conv_mm_relu(a1, kp["w1"], kp["b1"])                  # (m1p, 128) bf16
    y1 = y1[:m1, :conv1_out].reshape(B, h1, w1, conv1_out)     # NHWC

    # conv2 + flatten + fc1 + fc2 + softmax : one fused Pallas kernel.
    a2, h2, w2 = im2col_nhwc_posmajor(y1, kernel_size=4, stride=2)
    out = head_forward(a2.astype(jnp.bfloat16), kp["w2"], kp["b2"],
                       kp["wfc1"], kp["bfc1"], kp["wfc2"], kp["bfc2"],
                       batch=B, n_pos=h2 * w2, action_space=action_space)
    return out[:, :action_space]


# Pure-JAX reference (f32) for correctness check of the Pallas path.
def dqn_reference(params, x):
    x = x.astype(jnp.float32)
    y = jax.lax.conv_general_dilated(x, params["conv1_w"], (4, 4), "VALID",
                                     dimension_numbers=("NCHW", "OIHW", "NCHW"))
    y = jnp.maximum(y + params["conv1_b"][None, :, None, None], 0.0)
    y = jax.lax.conv_general_dilated(y, params["conv2_w"], (2, 2), "VALID",
                                     dimension_numbers=("NCHW", "OIHW", "NCHW"))
    y = jnp.maximum(y + params["conv2_b"][None, :, None, None], 0.0)
    f = y.reshape(y.shape[0], -1)
    h = jnp.maximum(f @ params["fc1_w"].T + params["fc1_b"], 0.0)
    logits = h @ params["fc2_w"].T + params["fc2_b"]
    return jax.nn.softmax(logits, axis=1)


if __name__ == "__main__":
    # Small, forward-consistent shapes:
    #   batch=2, k_frames=4, frame 32x32, action_space=4
    #   conv1 -> 7x7, conv2 -> 2x2, fc1_in = 64*2*2 = 256
    batch, k_frames, H, W, action_space = 2, 4, 32, 32, 4
    h1 = (H - 8) // 4 + 1
    w1 = (W - 8) // 4 + 1
    h2 = (h1 - 4) // 2 + 1
    w2 = (w1 - 4) // 2 + 1

    key = jax.random.PRNGKey(0)
    pkey, xkey = jax.random.split(key)
    params = init_params(pkey, action_space, H, W, k_frames)
    kparams = prepare_params(params, n_pos=h2 * w2)
    x = jax.random.uniform(xkey, (batch, k_frames, H, W), jnp.float32)

    fwd = jax.jit(functools.partial(dqn_forward, action_space=action_space))
    out = jax.block_until_ready(fwd(kparams, x))

    assert out.shape == (batch, action_space), out.shape
    # Softmax rows sum to ~1 (approx reciprocal => loose tolerance).
    assert jnp.allclose(jnp.sum(out, axis=1), 1.0, atol=1e-2)
    # Match the f32 reference within bf16 tolerance.
    ref = jax.block_until_ready(dqn_reference(params, x))
    assert jnp.allclose(out, ref, atol=5e-2), (out, ref)
    print("KERNEL_OK")
</pallas_src>

<mosaic_0001>
module attributes {stable_mosaic.version = 11 : i64} {
  func.func @_conv_mm_kernel(%arg0: memref<104x256xbf16, #tpu.memory_space<vmem>>, %arg1: memref<256x128xbf16, #tpu.memory_space<vmem>>, %arg2: memref<1x128xf32, #tpu.memory_space<vmem>>, %arg3: memref<104x128xbf16, #tpu.memory_space<vmem>>) attributes {dimension_semantics = [], scalar_prefetch = 0 : i64, scratch_operands = 0 : i64, tpu.core_type = #tpu.core_type<tc>} {
    %c0 = arith.constant 0 : index
    %c0_0 = arith.constant 0 : index
    %0 = vector.load %arg0[%c0, %c0_0] : memref<104x256xbf16, #tpu.memory_space<vmem>>, vector<104x256xbf16>
    %c0_1 = arith.constant 0 : index
    %c0_2 = arith.constant 0 : index
    %1 = vector.load %arg1[%c0_1, %c0_2] : memref<256x128xbf16, #tpu.memory_space<vmem>>, vector<256x128xbf16>
    %cst = arith.constant dense<0.000000e+00> : vector<104x128xf32>
    %2 = tpu.matmul %0, %1, %cst {dimension_numbers = #tpu.dot_dimension_numbers<[1], [0], [0], [1], [0, 0, 1, 1], [], []>} : vector<104x256xbf16>, vector<256x128xbf16>, vector<104x128xf32> -> vector<104x128xf32>
    %c0_3 = arith.constant 0 : index
    %c0_4 = arith.constant 0 : index
    %3 = vector.load %arg2[%c0_3, %c0_4] : memref<1x128xf32, #tpu.memory_space<vmem>>, vector<1x128xf32>
    %4 = vector.broadcast %3 : vector<1x128xf32> to vector<104x128xf32>
    %5 = arith.addf %2, %4 : vector<104x128xf32>
    %cst_5 = arith.constant 0.000000e+00 : f32
    %6 = vector.broadcast %cst_5 : f32 to vector<104x128xf32>
    %7 = arith.maximumf %5, %6 : vector<104x128xf32>
    %8 = arith.truncf %7 : vector<104x128xf32> to vector<104x128xbf16>
    %c0_6 = arith.constant 0 : index
    %c0_7 = arith.constant 0 : index
    %9 = vector.load %arg3[%c0_6, %c0_7] : memref<104x128xbf16, #tpu.memory_space<vmem>>, vector<104x128xbf16>
    tpu.vector_store %arg3[%c0_6, %c0_7], %8 {strides = array<i32>} : memref<104x128xbf16, #tpu.memory_space<vmem>>, vector<104x128xbf16>,
    return
  }
}

module attributes {stable_mosaic.version = 11 : i64} {
  func.func @_head_kernel(%arg0: memref<8x512xbf16, #tpu.memory_space<vmem>>, %arg1: memref<512x128xbf16, #tpu.memory_space<vmem>>, %arg2: memref<1x128xf32, #tpu.memory_space<vmem>>, %arg3: memref<4x128x512xbf16, #tpu.memory_space<vmem>>, %arg4: memref<1x512xf32, #tpu.memory_space<vmem>>, %arg5: memref<512x128xbf16, #tpu.memory_space<vmem>>, %arg6: memref<1x128xf32, #tpu.memory_space<vmem>>, %arg7: memref<2x128xf32, #tpu.memory_space<vmem>>) attributes {dimension_semantics = [], scalar_prefetch = 0 : i64, scratch_operands = 0 : i64, tpu.core_type = #tpu.core_type<tc>} {
    %c0 = arith.constant 0 : index
    %c0_0 = arith.constant 0 : index
    %0 = vector.load %arg0[%c0, %c0_0] : memref<8x512xbf16, #tpu.memory_space<vmem>>, vector<8x512xbf16>
    %c0_1 = arith.constant 0 : index
    %c0_2 = arith.constant 0 : index
    %1 = vector.load %arg1[%c0_1, %c0_2] : memref<512x128xbf16, #tpu.memory_space<vmem>>, vector<512x128xbf16>
    %cst = arith.constant dense<0.000000e+00> : vector<8x128xf32>
    %2 = tpu.matmul %0, %1, %cst {dimension_numbers = #tpu.dot_dimension_numbers<[1], [0], [0], [1], [0, 0, 1, 1], [], []>} : vector<8x512xbf16>, vector<512x128xbf16>, vector<8x128xf32> -> vector<8x128xf32>
    %c0_3 = arith.constant 0 : index
    %c0_4 = arith.constant 0 : index
    %3 = vector.load %arg2[%c0_3, %c0_4] : memref<1x128xf32, #tpu.memory_space<vmem>>, vector<1x128xf32>
    %4 = vector.broadcast %3 : vector<1x128xf32> to vector<8x128xf32>
    %5 = arith.addf %2, %4 : vector<8x128xf32>
    %cst_5 = arith.constant 0.000000e+00 : f32
    %6 = vector.broadcast %cst_5 : f32 to vector<8x128xf32>
    %7 = arith.maximumf %5, %6 : vector<8x128xf32>
    %cst_6 = arith.constant 0.000000e+00 : f32
    %8 = vector.broadcast %cst_6 : f32 to vector<2x512xf32>
    %9 = vector.extract_strided_slice %7 {offsets = [0, 0], sizes = [2, 128], strides = [1, 1]} : vector<8x128xf32> to vector<2x128xf32>
    %10 = arith.truncf %9 : vector<2x128xf32> to vector<2x128xbf16>
    %c0_7 = arith.constant 0 : index
    %c0_8 = arith.constant 0 : index
    %c0_9 = arith.constant 0 : index
    %11 = vector.load %arg3[%c0_7, %c0_8, %c0_9] : memref<4x128x512xbf16, #tpu.memory_space<vmem>>, vector<1x128x512xbf16>
    %12 = vector.shape_cast %11 : vector<1x128x512xbf16> to vector<128x512xbf16>
    %cst_10 = arith.constant dense<0.000000e+00> : vector<2x512xf32>
    %13 = tpu.matmul %10, %12, %cst_10 {dimension_numbers = #tpu.dot_dimension_numbers<[1], [0], [0], [1], [0, 0, 1, 1], [], []>} : vector<2x128xbf16>, vector<128x512xbf16>, vector<2x512xf32> -> vector<2x512xf32>
    %14 = arith.addf %8, %13 : vector<2x512xf32>
    %15 = vector.extract_strided_slice %7 {offsets = [2, 0], sizes = [2, 128], strides = [1, 1]} : vector<8x128xf32> to vector<2x128xf32>
    %16 = arith.truncf %15 : vector<2x128xf32> to vector<2x128xbf16>
    %c1 = arith.constant 1 : index
    %c0_11 = arith.constant 0 : index
    %c0_12 = arith.constant 0 : index
    %17 = vector.load %arg3[%c1, %c0_11, %c0_12] : memref<4x128x512xbf16, #tpu.memory_space<vmem>>, vector<1x128x512xbf16>
    %18 = vector.shape_cast %17 : vector<1x128x512xbf16> to vector<128x512xbf16>
    %cst_13 = arith.constant dense<0.000000e+00> : vector<2x512xf32>
    %19 = tpu.matmul %16, %18, %cst_13 {dimension_numbers = #tpu.dot_dimension_numbers<[1], [0], [0], [1], [0, 0, 1, 1], [], []>} : vector<2x128xbf16>, vector<128x512xbf16>, vector<2x512xf32> -> vector<2x512xf32>
    %20 = arith.addf %14, %19 : vector<2x512xf32>
    %21 = vector.extract_strided_slice %7 {offsets = [4, 0], sizes = [2, 128], strides = [1, 1]} : vector<8x128xf32> to vector<2x128xf32>
    %22 = arith.truncf %21 : vector<2x128xf32> to vector<2x128xbf16>
    %c2 = arith.constant 2 : index
    %c0_14 = arith.constant 0 : index
    %c0_15 = arith.constant 0 : index
    %23 = vector.load %arg3[%c2, %c0_14, %c0_15] : memref<4x128x512xbf16, #tpu.memory_space<vmem>>, vector<1x128x512xbf16>
    %24 = vector.shape_cast %23 : vector<1x128x512xbf16> to vector<128x512xbf16>
    %cst_16 = arith.constant dense<0.000000e+00> : vector<2x512xf32>
    %25 = tpu.matmul %22, %24, %cst_16 {dimension_numbers = #tpu.dot_dimension_numbers<[1], [0], [0], [1], [0, 0, 1, 1], [], []>} : vector<2x128xbf16>, vector<128x512xbf16>, vector<2x512xf32> -> vector<2x512xf32>
    %26 = arith.addf %20, %25 : vector<2x512xf32>
    %27 = vector.extract_strided_slice %7 {offsets = [6, 0], sizes = [2, 128], strides = [1, 1]} : vector<8x128xf32> to vector<2x128xf32>
    %28 = arith.truncf %27 : vector<2x128xf32> to vector<2x128xbf16>
    %c3 = arith.constant 3 : index
    %c0_17 = arith.constant 0 : index
    %c0_18 = arith.constant 0 : index
    %29 = vector.load %arg3[%c3, %c0_17, %c0_18] : memref<4x128x512xbf16, #tpu.memory_space<vmem>>, vector<1x128x512xbf16>
    %30 = vector.shape_cast %29 : vector<1x128x512xbf16> to vector<128x512xbf16>
    %cst_19 = arith.constant dense<0.000000e+00> : vector<2x512xf32>
    %31 = tpu.matmul %28, %30, %cst_19 {dimension_numbers = #tpu.dot_dimension_numbers<[1], [0], [0], [1], [0, 0, 1, 1], [], []>} : vector<2x128xbf16>, vector<128x512xbf16>, vector<2x512xf32> -> vector<2x512xf32>
    %32 = arith.addf %26, %31 : vector<2x512xf32>
    %c0_20 = arith.constant 0 : index
    %c0_21 = arith.constant 0 : index
    %33 = vector.load %arg4[%c0_20, %c0_21] : memref<1x512xf32, #tpu.memory_space<vmem>>, vector<1x512xf32>
    %34 = vector.broadcast %33 : vector<1x512xf32> to vector<2x512xf32>
    %35 = arith.addf %32, %34 : vector<2x512xf32>
    %cst_22 = arith.constant 0.000000e+00 : f32
    %36 = vector.broadcast %cst_22 : f32 to vector<2x512xf32>
    %37 = arith.maximumf %35, %36 : vector<2x512xf32>
    %38 = arith.truncf %37 : vector<2x512xf32> to vector<2x512xbf16>
    %c0_23 = arith.constant 0 : index
    %c0_24 = arith.constant 0 : index
    %39 = vector.load %arg5[%c0_23, %c0_24] : memref<512x128xbf16, #tpu.memory_space<vmem>>, vector<512x128xbf16>
    %cst_25 = arith.constant dense<0.000000e+00> : vector<2x128xf32>
    %40 = tpu.matmul %38, %39, %cst_25 {dimension_numbers = #tpu.dot_dimension_numbers<[1], [0], [0], [1], [0, 0, 1, 1], [], []>} : vector<2x512xbf16>, vector<512x128xbf16>, vector<2x128xf32> -> vector<2x128xf32>
    %c0_26 = arith.constant 0 : index
    %c0_27 = arith.constant 0 : index
    %41 = vector.load %arg6[%c0_26, %c0_27] : memref<1x128xf32, #tpu.memory_space<vmem>>, vector<1x128xf32>
    %42 = vector.broadcast %41 : vector<1x128xf32> to vector<2x128xf32>
    %43 = arith.addf %40, %42 : vector<2x128xf32>
    %44 = tpu.iota {dimensions = array<i32: 1>} : vector<2x128xi32>
    %c4_i32 = arith.constant 4 : i32
    %45 = vector.broadcast %c4_i32 : i32 to vector<2x128xi32>
    %46 = arith.cmpi slt, %44, %45 : vector<2x128xi32>
    %cst_28 = arith.constant -1.000000e+30 : f32
    %47 = vector.broadcast %cst_28 : f32 to vector<2x128xf32>
    %48 = arith.select %46, %43, %47 : vector<2x128xi1>, vector<2x128xf32>
    %cst_29 = arith.constant dense<0xFF800000> : vector<2xf32>
    %49 = vector.multi_reduction <maximumf>, %48, %cst_29 [1] : vector<2x128xf32> to vector<2xf32>
    %50 = vector.shape_cast %49 : vector<2xf32> to vector<2x1xf32>
    %51 = vector.broadcast %50 : vector<2x1xf32> to vector<2x128xf32>
    %52 = arith.subf %48, %51 : vector<2x128xf32>
    %53 = math.exp %52 : vector<2x128xf32>
    %cst_30 = arith.constant dense<0.000000e+00> : vector<2xf32>
    %54 = vector.multi_reduction <add>, %53, %cst_30 [1] : vector<2x128xf32> to vector<2xf32>
    %55 = vector.shape_cast %54 : vector<2xf32> to vector<2x1xf32>
    %56 = tpu.reciprocal %55 {approx = true} : vector<2x1xf32> -> vector<2x1xf32>
    %57 = vector.broadcast %56 : vector<2x1xf32> to vector<2x128xf32>
    %58 = arith.mulf %53, %57 : vector<2x128xf32>
    %c0_31 = arith.constant 0 : index
    %c0_32 = arith.constant 0 : index
    %59 = vector.load %arg7[%c0_31, %c0_32] : memref<2x128xf32, #tpu.memory_space<vmem>>, vector<2x128xf32>
    tpu.vector_store %arg7[%c0_31, %c0_32], %58 {strides = array<i32>} : memref<2x128xf32, #tpu.memory_space<vmem>>, vector<2x128xf32>,
    return
  }
}

</mosaic_0001>

<llo_original>
// kernel: dqn_forward.2
$region0: #{dqn_forward.2}
  #allocation0 [shape = 'u32[]', space=smem, size = 0x4, offset = 0x4, fixed_abs, tag = 'smem constant byte address 0x4 - core index']
  #allocation1 [shape = 'u32[144,128]{1,0:T(1,128)}', space=vmem, size = 0x12000, scoped, tag = 'internal scratch']
  %s0 = inlined_call_operand.vmem [shape: bf16[104,256], index: 0, kind: input, shape index: {}]
  %s1 = inlined_call_operand.vmem [shape: bf16[256,128], index: 1, kind: input, shape index: {}]
  %s2 = inlined_call_operand.vmem [shape: f32[1,128], index: 2, kind: input, shape index: {}]
  %s3 = inlined_call_operand.vmem [shape: bf16[104,128], index: 3, kind: output, shape index: {}]
  %s4 = sld [smem:[#allocation0]]
  $region22: #{dqn_forward.2} parent=0
    _
  %s6 = ssub.s32 1, %s4
  %s7 = scalar_select 0, %s6, %s4
  // Predicated region
  $region2: #{dqn_forward.2} parent=0 // pred_check
    _
  $region3: #{dqn_forward.2} parent=0 // pred_check_branch
    %9 = sbr.rel (0) target = $region5
  $region4: #{dqn_forward.2} parent=0 // pred_region
    _
  $region5: #{dqn_forward.2} parent=0 // pred_fallthru
    _
  // Predicated region
  $region6: #{dqn_forward.2} parent=0 // pred_check
    _
  $region7: #{dqn_forward.2} parent=0 // pred_check_branch
    %11 = sbr.rel (0) target = $region9
  $region8: #{dqn_forward.2} parent=0 // pred_region
    _
  $region9: #{dqn_forward.2} parent=0 // pred_fallthru
    _
  // Predicated region
  $region10: #{dqn_forward.2} parent=0 // pred_check
    _
  $region11: #{dqn_forward.2} parent=0 // pred_check_branch
    %13 = sbr.rel (0) target = $region13
  $region12: #{dqn_forward.2} parent=0 // pred_region
    _
  $region13: #{dqn_forward.2} parent=0 // pred_fallthru
    _
  %v15 = vld [vmem:[%s0] sm:$0xff]
  %v16 = vld [vmem:[%s0 + $0x8] sm:$0xff]
  %v17 = vld [vmem:[%s0 + $0x10] sm:$0xff]
  %v18 = vld [vmem:[%s0 + $0x18] sm:$0xff]
  %v19 = vld [vmem:[%s0 + $0x20] sm:$0xff]
  %v20 = vld [vmem:[%s0 + $0x28] sm:$0xff]
  %v21 = vld [vmem:[%s0 + $0x30] sm:$0xff]
  %v22 = vld [vmem:[%s0 + $0x38] sm:$0xff]
  %v23 = vld [vmem:[%s0 + $0x40] sm:$0xff]
  %v24 = vld [vmem:[%s0 + $0x48] sm:$0xff]
  %v25 = vld [vmem:[%s0 + $0x50] sm:$0xff]
  %v26 = vld [vmem:[%s0 + $0x58] sm:$0xff]
  %v27 = vld [vmem:[%s0 + $0x60] sm:$0xff]
  %v28 = vld [vmem:[%s1] sm:$0xf]
  %v29 = vld [vmem:[%s1 + $0x4] sm:$0xf]
  %v30 = vld [vmem:[%s1 + $0x8] sm:$0xf]
  %v31 = vld [vmem:[%s1 + $0xc] sm:$0xf]
  %v32 = vld [vmem:[%s1 + $0x10] sm:$0xf]
  %v33 = vld [vmem:[%s1 + $0x14] sm:$0xf]
  %v34 = vld [vmem:[%s1 + $0x18] sm:$0xf]
  %v35 = vld [vmem:[%s1 + $0x1c] sm:$0xf]
  %v36 = vld [vmem:[%s1 + $0x20] sm:$0xf]
  %v37 = vld [vmem:[%s1 + $0x24] sm:$0xf]
  %v38 = vld [vmem:[%s1 + $0x28] sm:$0xf]
  %v39 = vld [vmem:[%s1 + $0x2c] sm:$0xf]
  %v40 = vld [vmem:[%s1 + $0x30] sm:$0xf]
  %v41 = vld [vmem:[%s1 + $0x34] sm:$0xf]
  %v42 = vld [vmem:[%s1 + $0x38] sm:$0xf]
  %v43 = vld [vmem:[%s1 + $0x3c] sm:$0xf]
  %v44 = vld [vmem:[%s1 + $0x40] sm:$0xf]
  %v45 = vld [vmem:[%s1 + $0x44] sm:$0xf]
  %v46 = vld [vmem:[%s1 + $0x48] sm:$0xf]
  %v47 = vld [vmem:[%s1 + $0x4c] sm:$0xf]
  %v48 = vld [vmem:[%s1 + $0x50] sm:$0xf]
  %v49 = vld [vmem:[%s1 + $0x54] sm:$0xf]
  %v50 = vld [vmem:[%s1 + $0x58] sm:$0xf]
  %v51 = vld [vmem:[%s1 + $0x5c] sm:$0xf]
  %v52 = vld [vmem:[%s1 + $0x60] sm:$0xf]
  %v53 = vld [vmem:[%s1 + $0x64] sm:$0xf]
  %v54 = vld [vmem:[%s1 + $0x68] sm:$0xf]
  %v55 = vld [vmem:[%s1 + $0x6c] sm:$0xf]
  %v56 = vld [vmem:[%s1 + $0x70] sm:$0xf]
  %v57 = vld [vmem:[%s1 + $0x74] sm:$0xf]
  %v58 = vld [vmem:[%s1 + $0x78] sm:$0xf]
  %v59 = vld [vmem:[%s1 + $0x7c] sm:$0xf]
  %v60 = vld [vmem:[%s2] sm:$0x1]
  %v62 = vlaneseq
  %v63 = vshrl.u32 %v62, 7
  %v64 = vsub.s32 0, %v63
  %v65 = vrot.slane %v60, %v64
  %v80 = vunpack.c.l.b16 %v15
  %v81 = vunpack.c.h.b16 %v15
  %v82 = vunpack.c.l.b16 %v16
  %v83 = vunpack.c.h.b16 %v16
  %v84 = vunpack.c.l.b16 %v17
  %v85 = vunpack.c.h.b16 %v17
  %v86 = vunpack.c.l.b16 %v18
  %v87 = vunpack.c.h.b16 %v18
  %v88 = vunpack.c.l.b16 %v19
  %v89 = vunpack.c.h.b16 %v19
  %v90 = vunpack.c.l.b16 %v20
  %v91 = vunpack.c.h.b16 %v20
  %v92 = vunpack.c.l.b16 %v21
  %v93 = vunpack.c.h.b16 %v21
  %v94 = vunpack.c.l.b16 %v22
  %v95 = vunpack.c.h.b16 %v22
  %v96 = vunpack.c.l.b16 %v23
  %v97 = vunpack.c.h.b16 %v23
  %v98 = vunpack.c.l.b16 %v24
  %v99 = vunpack.c.h.b16 %v24
  %v100 = vunpack.c.l.b16 %v25
  %v101 = vunpack.c.h.b16 %v25
  %v102 = vunpack.c.l.b16 %v26
  %v103 = vunpack.c.h.b16 %v26
  %v104 = vunpack.c.l.b16 %v27
  %v105 = vunpack.c.h.b16 %v27
  %v106 = vpack.c.b16 %v82, %v80
  %v107 = vpack.c.b16 %v83, %v81
  %v108 = vpack.c.b16 %v86, %v84
  %v109 = vpack.c.b16 %v87, %v85
  %v110 = vpack.c.b16 %v90, %v88
  %v111 = vpack.c.b16 %v91, %v89
  %v112 = vpack.c.b16 %v94, %v92
  %v113 = vpack.c.b16 %v95, %v93
  %v114 = vpack.c.b16 %v98, %v96
  %v115 = vpack.c.b16 %v99, %v97
  %v116 = vpack.c.b16 %v102, %v100
  %v117 = vpack.c.b16 %v103, %v101
  %v118 = vpack.c.b16 %v104, %v104
  %v119 = vpack.c.b16 %v105, %v105
  %v166 = vunpack.c.l.b16 %v28
  %v167 = vunpack.c.l.b16 %v29
  %v168 = vunpack.c.l.b16 %v30
  %v169 = vunpack.c.l.b16 %v31
  %v170 = vunpack.c.l.b16 %v32
  %v171 = vunpack.c.l.b16 %v33
  %v172 = vunpack.c.l.b16 %v34
  %v173 = vunpack.c.l.b16 %v35
  %v174 = vunpack.c.l.b16 %v36
  %v175 = vunpack.c.l.b16 %v37
  %v176 = vunpack.c.l.b16 %v38
  %v177 = vunpack.c.l.b16 %v39
  %v178 = vunpack.c.l.b16 %v40
  %v179 = vunpack.c.l.b16 %v41
  %v180 = vunpack.c.l.b16 %v42
  %v181 = vunpack.c.l.b16 %v43
  %v182 = vunpack.c.l.b16 %v44
  %v183 = vunpack.c.l.b16 %v45
  %v184 = vunpack.c.l.b16 %v46
  %v185 = vunpack.c.l.b16 %v47
  %v186 = vunpack.c.l.b16 %v48
  %v187 = vunpack.c.l.b16 %v49
  %v188 = vunpack.c.l.b16 %v50
  %v189 = vunpack.c.l.b16 %v51
  %v190 = vunpack.c.l.b16 %v52
  %v191 = vunpack.c.l.b16 %v53
  %v192 = vunpack.c.l.b16 %v54
  %v193 = vunpack.c.l.b16 %v55
  %v194 = vunpack.c.l.b16 %v56
  %v195 = vunpack.c.l.b16 %v57
  %v196 = vunpack.c.l.b16 %v58
  %v197 = vunpack.c.l.b16 %v59
  %v198 = vpack.c.b16 %v167, %v166
  %v199 = vpack.c.b16 %v169, %v168
  %v200 = vpack.c.b16 %v171, %v170
  %v201 = vpack.c.b16 %v173, %v172
  %v202 = vpack.c.b16 %v175, %v174
  %v203 = vpack.c.b16 %v177, %v176
  %v204 = vpack.c.b16 %v179, %v178
  %v205 = vpack.c.b16 %v181, %v180
  %v206 = vpack.c.b16 %v183, %v182
  %v207 = vpack.c.b16 %v185, %v184
  %v208 = vpack.c.b16 %v187, %v186
  %v209 = vpack.c.b16 %v189, %v188
  %v210 = vpack.c.b16 %v191, %v190
  %v211 = vpack.c.b16 %v193, %v192
  %v212 = vpack.c.b16 %v195, %v194
  %v213 = vpack.c.b16 %v197, %v196
  %230 = vmatprep.subr.bf16.mxu0 0
  %231 = vmatpush1.bf16.msra.mxu0 %v198
  %232 = vmatprep.subr.bf16.mxu0 0
  %233 = vmatpush1.bf16.msra.mxu0 %v199
  %234 = vmatprep.subr.bf16.mxu0 0
  %235 = vmatpush1.bf16.msra.mxu0 %v200
  %236 = vmatprep.subr.bf16.mxu0 0
  %237 = vmatpush1.bf16.msra.mxu0 %v201
  %238 = vmatprep.subr.bf16.mxu0 0
  %239 = vmatpush1.bf16.msra.mxu0 %v202
  %240 = vmatprep.subr.bf16.mxu0 0
  %241 = vmatpush1.bf16.msra.mxu0 %v203
  %242 = vmatprep.subr.bf16.mxu0 0
  %243 = vmatpush1.bf16.msra.mxu0 %v204
  %244 = vmatprep.subr.bf16.mxu0 0
  %245 = vmatpush1.bf16.msra.mxu0 %v205
  %246 = vmatprep.subr.bf16.mxu0 0
  %247 = vmatpush1.bf16.msra.mxu0 %v206
  %248 = vmatprep.subr.bf16.mxu0 0
  %249 = vmatpush1.bf16.msra.mxu0 %v207
  %250 = vmatprep.subr.bf16.mxu0 0
  %251 = vmatpush1.bf16.msra.mxu0 %v208
  %252 = vmatprep.subr.bf16.mxu0 0
  %253 = vmatpush1.bf16.msra.mxu0 %v209
  %254 = vmatprep.subr.bf16.mxu0 0
  %255 = vmatpush1.bf16.msra.mxu0 %v210
  %256 = vmatprep.subr.bf16.mxu0 0
  %257 = vmatpush1.bf16.msra.mxu0 %v211
  %258 = vmatprep.subr.bf16.mxu0 0
  %259 = vmatpush1.bf16.msra.mxu0 %v212
  %260 = vmatprep.subr.bf16.mxu0 0
  %261 = vmatpush1.bf16.msra.mxu0 %v213
  %262 = vmatprep.mubr.bf16.mxu0 %v107
  %263 = vmatmul.mubr.bf16.gmra.mrb[0].mxu0 %v106
  %v264 = vpop.f32.mrb[0].mxu0
  %v265 = vadd.f32 %v65, %v264
  %v266 = vpop.f32.mrb[0].mxu0
  %v267 = vpop.f32.mrb[0].mxu0
  %v268 = vadd.f32 %v65, %v267
  %v269 = vpop.f32.mrb[0].mxu0
  %270 = vmatprep.mubr.bf16.mxu0 %v109
  %271 = vmatmul.mubr.bf16.gmra.mrb[0].mxu0 %v108
  %v272 = vpop.f32.mrb[0].mxu0
  %v273 = vadd.f32 %v65, %v272
  %v274 = vpop.f32.mrb[0].mxu0
  %v275 = vpop.f32.mrb[0].mxu0
  %v276 = vadd.f32 %v65, %v275
  %v277 = vpop.f32.mrb[0].mxu0
  %278 = vmatprep.mubr.bf16.mxu0 %v111
  %279 = vmatmul.mubr.bf16.gmra.mrb[0].mxu0 %v110
  %v280 = vpop.f32.mrb[0].mxu0
  %v281 = vadd.f32 %v65, %v280
  %v282 = vpop.f32.mrb[0].mxu0
  %v283 = vpop.f32.mrb[0].mxu0
  %v284 = vadd.f32 %v65, %v283
  %v285 = vpop.f32.mrb[0].mxu0
  %286 = vmatprep.mubr.bf16.mxu0 %v113
  %287 = vmatmul.mubr.bf16.gmra.mrb[0].mxu0 %v112
  %v288 = vpop.f32.mrb[0].mxu0
  %v289 = vadd.f32 %v65, %v288
  %v290 = vpop.f32.mrb[0].mxu0
  %v291 = vpop.f32.mrb[0].mxu0
  %v292 = vadd.f32 %v65, %v291
  %v293 = vpop.f32.mrb[0].mxu0
  %294 = vmatprep.mubr.bf16.mxu0 %v115
  %295 = vmatmul.mubr.bf16.gmra.mrb[0].mxu0 %v114
  %v296 = vpop.f32.mrb[0].mxu0
  %v297 = vadd.f32 %v65, %v296
  %v298 = vpop.f32.mrb[0].mxu0
  %v299 = vpop.f32.mrb[0].mxu0
  %v300 = vadd.f32 %v65, %v299
  %v301 = vpop.f32.mrb[0].mxu0
  %302 = vmatprep.mubr.bf16.mxu0 %v117
  %303 = vmatmul.mubr.bf16.gmra.mrb[0].mxu0 %v116
  %v304 = vpop.f32.mrb[0].mxu0
  %v305 = vadd.f32 %v65, %v304
  %v306 = vpop.f32.mrb[0].mxu0
  %v307 = vpop.f32.mrb[0].mxu0
  %v308 = vadd.f32 %v65, %v307
  %v309 = vpop.f32.mrb[0].mxu0
  %310 = vmatprep.mubr.bf16.mxu0 %v119
  %311 = vmatmul.mubr.bf16.gmra.mrb[0].mxu0 %v118
  %v312 = vpop.f32.mrb[0].mxu0
  %v313 = vadd.f32 %v65, %v312
  %v314 = vpop.f32.mrb[0].mxu0
  %v315 = vpop.f32.mrb[0].mxu0
  %v316 = vpop.f32.mrb[0].mxu0
  %317 = vdwg.mxu0
  %v318 = vmax.f32 %v265, 0.0
  %v319 = vmax.f32 %v268, 0.0
  %v320 = vmax.f32 %v273, 0.0
  %v321 = vmax.f32 %v276, 0.0
  %v322 = vmax.f32 %v281, 0.0
  %v323 = vmax.f32 %v284, 0.0
  %v324 = vmax.f32 %v289, 0.0
  %v325 = vmax.f32 %v292, 0.0
  %v326 = vmax.f32 %v297, 0.0
  %v327 = vmax.f32 %v300, 0.0
  %v328 = vmax.f32 %v305, 0.0
  %v329 = vmax.f32 %v308, 0.0
  %v330 = vmax.f32 %v313, 0.0
  %v331 = vpack.c.bf16 %v319, %v318
  %v332 = vpack.c.bf16 %v321, %v320
  %v333 = vpack.c.bf16 %v323, %v322
  %v334 = vpack.c.bf16 %v325, %v324
  %v335 = vpack.c.bf16 %v327, %v326
  %v336 = vpack.c.bf16 %v329, %v328
  %v337 = vpack.c.bf16 %v330, %v330
  %v345 = vunpack.c.l.b16 %v331
  %v346 = vunpack.c.h.b16 %v331
  %v347 = vunpack.c.l.b16 %v332
  %v348 = vunpack.c.h.b16 %v332
  %v349 = vunpack.c.l.b16 %v333
  %v350 = vunpack.c.h.b16 %v333
  %v351 = vunpack.c.l.b16 %v334
  %v352 = vunpack.c.h.b16 %v334
  %v353 = vunpack.c.l.b16 %v335
  %v354 = vunpack.c.h.b16 %v335
  %v355 = vunpack.c.l.b16 %v336
  %v356 = vunpack.c.h.b16 %v336
  %v357 = vunpack.c.l.b16 %v337
  %v358 = vpack.c.b16 %v345, %v345
  %v359 = vpack.c.b16 %v346, %v346
  %v360 = vpack.c.b16 %v347, %v347
  %v361 = vpack.c.b16 %v348, %v348
  %v362 = vpack.c.b16 %v349, %v349
  %v363 = vpack.c.b16 %v350, %v350
  %v364 = vpack.c.b16 %v351, %v351
  %v365 = vpack.c.b16 %v352, %v352
  %v366 = vpack.c.b16 %v353, %v353
  %v367 = vpack.c.b16 %v354, %v354
  %v368 = vpack.c.b16 %v355, %v355
  %v369 = vpack.c.b16 %v356, %v356
  %v370 = vpack.c.b16 %v357, %v357
  %384 = vst [vmem:[%s3] sm:$0xf] %v358
  %385 = vst [vmem:[%s3 + $0x4] sm:$0xf] %v359
  %386 = vst [vmem:[%s3 + $0x8] sm:$0xf] %v360
  %387 = vst [vmem:[%s3 + $0xc] sm:$0xf] %v361
  %388 = vst [vmem:[%s3 + $0x10] sm:$0xf] %v362
  %389 = vst [vmem:[%s3 + $0x14] sm:$0xf] %v363
  %390 = vst [vmem:[%s3 + $0x18] sm:$0xf] %v364
  %391 = vst [vmem:[%s3 + $0x1c] sm:$0xf] %v365
  %392 = vst [vmem:[%s3 + $0x20] sm:$0xf] %v366
  %393 = vst [vmem:[%s3 + $0x24] sm:$0xf] %v367
  %394 = vst [vmem:[%s3 + $0x28] sm:$0xf] %v368
  %395 = vst [vmem:[%s3 + $0x2c] sm:$0xf] %v369
  %396 = vst [vmem:[%s3 + $0x30] sm:$0xf] %v370
  // Predicated region
  $region14: #{dqn_forward.2} parent=0 // pred_check
    _
  $region15: #{dqn_forward.2} parent=0 // pred_check_branch
    %398 = sbr.rel (0) target = $region17
  $region16: #{dqn_forward.2} parent=0 // pred_region
    _
  $region17: #{dqn_forward.2} parent=0 // pred_fallthru
    _
  // Predicated region
  $region18: #{dqn_forward.2} parent=0 // pred_check
    _
  $region19: #{dqn_forward.2} parent=0 // pred_check_branch
    %400 = sbr.rel (0) target = $region21
  $region20: #{dqn_forward.2} parent=0 // pred_region
    _
  $region21: #{dqn_forward.2} parent=0 // pred_fallthru
    _

// kernel: dqn_forward.3
$region0: #{dqn_forward.3}
  #allocation0 [shape = 'u32[]', space=smem, size = 0x4, offset = 0x4, fixed_abs, tag = 'smem constant byte address 0x4 - core index']
  #allocation1 [shape = 'u32[144,128]{1,0:T(1,128)}', space=vmem, size = 0x12000, scoped, tag = 'internal scratch']
  %s0 = inlined_call_operand.vmem [shape: bf16[8,512], index: 0, kind: input, shape index: {}]
  %s1 = inlined_call_operand.vmem [shape: bf16[512,128], index: 1, kind: input, shape index: {}]
  %s2 = inlined_call_operand.vmem [shape: f32[1,128], index: 2, kind: input, shape index: {}]
  %s3 = inlined_call_operand.vmem [shape: bf16[4,128,512], index: 3, kind: input, shape index: {}]
  %s4 = inlined_call_operand.vmem [shape: f32[1,512], index: 4, kind: input, shape index: {}]
  %s5 = inlined_call_operand.vmem [shape: bf16[512,128], index: 5, kind: input, shape index: {}]
  %s6 = inlined_call_operand.vmem [shape: f32[1,128], index: 6, kind: input, shape index: {}]
  %s7 = inlined_call_operand.hbm [shape: f32[2,128], index: 7, kind: output, shape index: {}]
  %s8 = sld [smem:[#allocation0]]
  $region38: #{dqn_forward.3} parent=0
    _
  %s10 = ssub.s32 1, %s8
  %s11 = scalar_select 0, %s10, %s8
  $region1: #{dqn_forward.3} parent=0
    #allocation2 [shape = 'u8[1024]{0}', space=vmem, size = 0x400, scoped, tag = 'output window, operand 0, single buffered']
    #allocation3 [shape = 's32[1]{0}', space=sflag, size = 0x4, scoped, tag = 'scoped memory for dqn_forward.3']
    %12 = vsyncpa [#allocation3], 0
    // Predicated region
    $region2: #{dqn_forward.3} parent=1 // pred_check
      _
    $region3: #{dqn_forward.3} parent=1 // pred_check_branch
      %14 = sbr.rel (0) target = $region5
    $region4: #{dqn_forward.3} parent=1 // pred_region
      _
    $region5: #{dqn_forward.3} parent=1 // pred_fallthru
      _
    // Predicated region
    $region6: #{dqn_forward.3} parent=1 // pred_check
      _
    $region7: #{dqn_forward.3} parent=1 // pred_check_branch
      %16 = sbr.rel (0) target = $region9
    $region8: #{dqn_forward.3} parent=1 // pred_region
      _
    $region9: #{dqn_forward.3} parent=1 // pred_fallthru
      _
    // Predicated region
    $region10: #{dqn_forward.3} parent=1 // pred_check
      _
    $region11: #{dqn_forward.3} parent=1 // pred_check_branch
      %18 = sbr.rel (0) target = $region13
    $region12: #{dqn_forward.3} parent=1 // pred_region
      _
    $region13: #{dqn_forward.3} parent=1 // pred_fallthru
      _
    // Predicated region
    $region14: #{dqn_forward.3} parent=1 // pred_check
      _
    $region15: #{dqn_forward.3} parent=1 // pred_check_branch
      %20 = sbr.rel (0) target = $region17
    $region16: #{dqn_forward.3} parent=1 // pred_region
      _
    $region17: #{dqn_forward.3} parent=1 // pred_fallthru
      _
    // Predicated region
    $region18: #{dqn_forward.3} parent=1 // pred_check
      _
    $region19: #{dqn_forward.3} parent=1 // pred_check_branch
      %22 = sbr.rel (0) target = $region21
    $region20: #{dqn_forward.3} parent=1 // pred_region
      _
    $region21: #{dqn_forward.3} parent=1 // pred_fallthru
      _
    // Predicated region
    $region22: #{dqn_forward.3} parent=1 // pred_check
      _
    $region23: #{dqn_forward.3} parent=1 // pred_check_branch
      %24 = sbr.rel (0) target = $region25
    $region24: #{dqn_forward.3} parent=1 // pred_region
      _
    $region25: #{dqn_forward.3} parent=1 // pred_fallthru
      _
    // Predicated region
    $region26: #{dqn_forward.3} parent=1 // pred_check
      _
    $region27: #{dqn_forward.3} parent=1 // pred_check_branch
      %26 = sbr.rel (0) target = $region29
    $region28: #{dqn_forward.3} parent=1 // pred_region
      _
    $region29: #{dqn_forward.3} parent=1 // pred_fallthru
      _
    %v28 = vld [vmem:[%s0] sm:$0xff]
    %v29 = vld [vmem:[%s0 + $0x8] sm:$0xff]
    %v30 = vld [vmem:[%s1] sm:$0xf]
    %v31 = vld [vmem:[%s1 + $0x4] sm:$0xf]
    %v32 = vld [vmem:[%s1 + $0x8] sm:$0xf]
    %v33 = vld [vmem:[%s1 + $0xc] sm:$0xf]
    %v34 = vld [vmem:[%s1 + $0x10] sm:$0xf]
    %v35 = vld [vmem:[%s1 + $0x14] sm:$0xf]
    %v36 = vld [vmem:[%s1 + $0x18] sm:$0xf]
    %v37 = vld [vmem:[%s1 + $0x1c] sm:$0xf]
    %v38 = vld [vmem:[%s1 + $0x20] sm:$0xf]
    %v39 = vld [vmem:[%s1 + $0x24] sm:$0xf]
    %v40 = vld [vmem:[%s1 + $0x28] sm:$0xf]
    %v41 = vld [vmem:[%s1 + $0x2c] sm:$0xf]
    %v42 = vld [vmem:[%s1 + $0x30] sm:$0xf]
    %v43 = vld [vmem:[%s1 + $0x34] sm:$0xf]
    %v44 = vld [vmem:[%s1 + $0x38] sm:$0xf]
    %v45 = vld [vmem:[%s1 + $0x3c] sm:$0xf]
    %v46 = vld [vmem:[%s1 + $0x40] sm:$0xf]
    %v47 = vld [vmem:[%s1 + $0x44] sm:$0xf]
    %v48 = vld [vmem:[%s1 + $0x48] sm:$0xf]
    %v49 = vld [vmem:[%s1 + $0x4c] sm:$0xf]
    %v50 = vld [vmem:[%s1 + $0x50] sm:$0xf]
    %v51 = vld [vmem:[%s1 + $0x54] sm:$0xf]
    %v52 = vld [vmem:[%s1 + $0x58] sm:$0xf]
    %v53 = vld [vmem:[%s1 + $0x5c] sm:$0xf]
    %v54 = vld [vmem:[%s1 + $0x60] sm:$0xf]
    %v55 = vld [vmem:[%s1 + $0x64] sm:$0xf]
    %v56 = vld [vmem:[%s1 + $0x68] sm:$0xf]
    %v57 = vld [vmem:[%s1 + $0x6c] sm:$0xf]
    %v58 = vld [vmem:[%s1 + $0x70] sm:$0xf]
    %v59 = vld [vmem:[%s1 + $0x74] sm:$0xf]
    %v60 = vld [vmem:[%s1 + $0x78] sm:$0xf]
    %v61 = vld [vmem:[%s1 + $0x7c] sm:$0xf]
    %v62 = vld [vmem:[%s1 + $0x80] sm:$0xf]
    %v63 = vld [vmem:[%s1 + $0x84] sm:$0xf]
    %v64 = vld [vmem:[%s1 + $0x88] sm:$0xf]
    %v65 = vld [vmem:[%s1 + $0x8c] sm:$0xf]
    %v66 = vld [vmem:[%s1 + $0x90] sm:$0xf]
    %v67 = vld [vmem:[%s1 + $0x94] sm:$0xf]
    %v68 = vld [vmem:[%s1 + $0x98] sm:$0xf]
    %v69 = vld [vmem:[%s1 + $0x9c] sm:$0xf]
    %v70 = vld [vmem:[%s1 + $0xa0] sm:$0xf]
    %v71 = vld [vmem:[%s1 + $0xa4] sm:$0xf]
    %v72 = vld [vmem:[%s1 + $0xa8] sm:$0xf]
    %v73 = vld [vmem:[%s1 + $0xac] sm:$0xf]
    %v74 = vld [vmem:[%s1 + $0xb0] sm:$0xf]
    %v75 = vld [vmem:[%s1 + $0xb4] sm:$0xf]
    %v76 = vld [vmem:[%s1 + $0xb8] sm:$0xf]
    %v77 = vld [vmem:[%s1 + $0xbc] sm:$0xf]
    %v78 = vld [vmem:[%s1 + $0xc0] sm:$0xf]
    %v79 = vld [vmem:[%s1 + $0xc4] sm:$0xf]
    %v80 = vld [vmem:[%s1 + $0xc8] sm:$0xf]
    %v81 = vld [vmem:[%s1 + $0xcc] sm:$0xf]
    %v82 = vld [vmem:[%s1 + $0xd0] sm:$0xf]
    %v83 = vld [vmem:[%s1 + $0xd4] sm:$0xf]
    %v84 = vld [vmem:[%s1 + $0xd8] sm:$0xf]
    %v85 = vld [vmem:[%s1 + $0xdc] sm:$0xf]
    %v86 = vld [vmem:[%s1 + $0xe0] sm:$0xf]
    %v87 = vld [vmem:[%s1 + $0xe4] sm:$0xf]
    %v88 = vld [vmem:[%s1 + $0xe8] sm:$0xf]
    %v89 = vld [vmem:[%s1 + $0xec] sm:$0xf]
    %v90 = vld [vmem:[%s1 + $0xf0] sm:$0xf]
    %v91 = vld [vmem:[%s1 + $0xf4] sm:$0xf]
    %v92 = vld [vmem:[%s1 + $0xf8] sm:$0xf]
    %v93 = vld [vmem:[%s1 + $0xfc] sm:$0xf]
    %v94 = vld [vmem:[%s2] sm:$0x1]
    %v96 = vlaneseq
    %v97 = vshrl.u32 %v96, 7
    %v98 = vsub.s32 0, %v97
    %v99 = vrot.slane %v94, %v98
    %v103 = vunpack.c.l.b16 %v28
    %v104 = vunpack.c.h.b16 %v28
    %v105 = vunpack.c.l.b16 %v29
    %v106 = vunpack.c.h.b16 %v29
    %v107 = vpack.c.b16 %v103, %v103
    %v108 = vpack.c.b16 %v104, %v104
    %v109 = vpack.c.b16 %v105, %v105
    %v110 = vpack.c.b16 %v106, %v106
    %v179 = vunpack.c.l.b16 %v30
    %v180 = vunpack.c.l.b16 %v31
    %v181 = vunpack.c.l.b16 %v32
    %v182 = vunpack.c.l.b16 %v33
    %v183 = vunpack.c.l.b16 %v34
    %v184 = vunpack.c.l.b16 %v35
    %v185 = vunpack.c.l.b16 %v36
    %v186 = vunpack.c.l.b16 %v37
    %v187 = vunpack.c.l.b16 %v38
    %v188 = vunpack.c.l.b16 %v39
    %v189 = vunpack.c.l.b16 %v40
    %v190 = vunpack.c.l.b16 %v41
    %v191 = vunpack.c.l.b16 %v42
    %v192 = vunpack.c.l.b16 %v43
    %v193 = vunpack.c.l.b16 %v44
    %v194 = vunpack.c.l.b16 %v45
    %v195 = vunpack.c.l.b16 %v46
    %v196 = vunpack.c.l.b16 %v47
    %v197 = vunpack.c.l.b16 %v48
    %v198 = vunpack.c.l.b16 %v49
    %v199 = vunpack.c.l.b16 %v50
    %v200 = vunpack.c.l.b16 %v51
    %v201 = vunpack.c.l.b16 %v52
    %v202 = vunpack.c.l.b16 %v53
    %v203 = vunpack.c.l.b16 %v54
    %v204 = vunpack.c.l.b16 %v55
    %v205 = vunpack.c.l.b16 %v56
    %v206 = vunpack.c.l.b16 %v57
    %v207 = vunpack.c.l.b16 %v58
    %v208 = vunpack.c.l.b16 %v59
    %v209 = vunpack.c.l.b16 %v60
    %v210 = vunpack.c.l.b16 %v61
    %v211 = vunpack.c.l.b16 %v62
    %v212 = vunpack.c.l.b16 %v63
    %v213 = vunpack.c.l.b16 %v64
    %v214 = vunpack.c.l.b16 %v65
    %v215 = vunpack.c.l.b16 %v66
    %v216 = vunpack.c.l.b16 %v67
    %v217 = vunpack.c.l.b16 %v68
    %v218 = vunpack.c.l.b16 %v69
    %v219 = vunpack.c.l.b16 %v70
    %v220 = vunpack.c.l.b16 %v71
    %v221 = vunpack.c.l.b16 %v72
    %v222 = vunpack.c.l.b16 %v73
    %v223 = vunpack.c.l.b16 %v74
    %v224 = vunpack.c.l.b16 %v75
    %v225 = vunpack.c.l.b16 %v76
    %v226 = vunpack.c.l.b16 %v77
    %v227 = vunpack.c.l.b16 %v78
    %v228 = vunpack.c.l.b16 %v79
    %v229 = vunpack.c.l.b16 %v80
    %v230 = vunpack.c.l.b16 %v81
    %v231 = vunpack.c.l.b16 %v82
    %v232 = vunpack.c.l.b16 %v83
    %v233 = vunpack.c.l.b16 %v84
    %v234 = vunpack.c.l.b16 %v85
    %v235 = vunpack.c.l.b16 %v86
    %v236 = vunpack.c.l.b16 %v87
    %v237 = vunpack.c.l.b16 %v88
    %v238 = vunpack.c.l.b16 %v89
    %v239 = vunpack.c.l.b16 %v90
    %v240 = vunpack.c.l.b16 %v91
    %v241 = vunpack.c.l.b16 %v92
    %v242 = vunpack.c.l.b16 %v93
    %v243 = vpack.c.b16 %v180, %v179
    %v244 = vpack.c.b16 %v182, %v181
    %v245 = vpack.c.b16 %v184, %v183
    %v246 = vpack.c.b16 %v186, %v185
    %v247 = vpack.c.b16 %v188, %v187
    %v248 = vpack.c.b16 %v190, %v189
    %v249 = vpack.c.b16 %v192, %v191
    %v250 = vpack.c.b16 %v194, %v193
    %v251 = vpack.c.b16 %v196, %v195
    %v252 = vpack.c.b16 %v198, %v197
    %v253 = vpack.c.b16 %v200, %v199
    %v254 = vpack.c.b16 %v202, %v201
    %v255 = vpack.c.b16 %v204, %v203
    %v256 = vpack.c.b16 %v206, %v205
    %v257 = vpack.c.b16 %v208, %v207
    %v258 = vpack.c.b16 %v210, %v209
    %v259 = vpack.c.b16 %v212, %v211
    %v260 = vpack.c.b16 %v214, %v213
    %v261 = vpack.c.b16 %v216, %v215
    %v262 = vpack.c.b16 %v218, %v217
    %v263 = vpack.c.b16 %v220, %v219
    %v264 = vpack.c.b16 %v222, %v221
    %v265 = vpack.c.b16 %v224, %v223
    %v266 = vpack.c.b16 %v226, %v225
    %v267 = vpack.c.b16 %v228, %v227
    %v268 = vpack.c.b16 %v230, %v229
    %v269 = vpack.c.b16 %v232, %v231
    %v270 = vpack.c.b16 %v234, %v233
    %v271 = vpack.c.b16 %v236, %v235
    %v272 = vpack.c.b16 %v238, %v237
    %v273 = vpack.c.b16 %v240, %v239
    %v274 = vpack.c.b16 %v242, %v241
    %307 = vmatprep.subr.bf16.mxu0 0
    %308 = vmatpush1.bf16.msra.mxu0 %v243
    %309 = vmatprep.subr.bf16.mxu0 0
    %310 = vmatpush1.bf16.msra.mxu0 %v244
    %311 = vmatprep.subr.bf16.mxu0 0
    %312 = vmatpush1.bf16.msra.mxu0 %v245
    %313 = vmatprep.subr.bf16.mxu0 0
    %314 = vmatpush1.bf16.msra.mxu0 %v246
    %315 = vmatprep.subr.bf16.mxu0 0
    %316 = vmatpush1.bf16.msra.mxu0 %v247
    %317 = vmatprep.subr.bf16.mxu0 0
    %318 = vmatpush1.bf16.msra.mxu0 %v248
    %319 = vmatprep.subr.bf16.mxu0 0
    %320 = vmatpush1.bf16.msra.mxu0 %v249
    %321 = vmatprep.subr.bf16.mxu0 0
    %322 = vmatpush1.bf16.msra.mxu0 %v250
    %323 = vmatprep.subr.bf16.mxu0 0
    %324 = vmatpush1.bf16.msra.mxu0 %v251
    %325 = vmatprep.subr.bf16.mxu0 0
    %326 = vmatpush1.bf16.msra.mxu0 %v252
    %327 = vmatprep.subr.bf16.mxu0 0
    %328 = vmatpush1.bf16.msra.mxu0 %v253
    %329 = vmatprep.subr.bf16.mxu0 0
    %330 = vmatpush1.bf16.msra.mxu0 %v254
    %331 = vmatprep.subr.bf16.mxu0 0
    %332 = vmatpush1.bf16.msra.mxu0 %v255
    %333 = vmatprep.subr.bf16.mxu0 0
    %334 = vmatpush1.bf16.msra.mxu0 %v256
    %335 = vmatprep.subr.bf16.mxu0 0
    %336 = vmatpush1.bf16.msra.mxu0 %v257
    %337 = vmatprep.subr.bf16.mxu0 0
    %338 = vmatpush1.bf16.msra.mxu0 %v258
    %339 = vmatprep.mubr.bf16.mxu0 %v108
    %340 = vmatmul.mubr.bf16.gmra.mrb[0].mxu0 %v107
    %v341 = vpop.f32.mrb[0].mxu0
    %v342 = vadd.f32 %v99, %v341
    %v343 = vpop.f32.mrb[0].mxu0
    %v344 = vpop.f32.mrb[0].mxu0
    %v345 = vpop.f32.mrb[0].mxu0
    %346 = vdwg.mxu0
    %347 = vmatprep.subr.bf16.mxu0 0
    %348 = vmatpush1.bf16.msra.mxu0 %v259
    %349 = vmatprep.subr.bf16.mxu0 0
    %350 = vmatpush1.bf16.msra.mxu0 %v260
    %351 = vmatprep.subr.bf16.mxu0 0
    %352 = vmatpush1.bf16.msra.mxu0 %v261
    %353 = vmatprep.subr.bf16.mxu0 0
    %354 = vmatpush1.bf16.msra.mxu0 %v262
    %355 = vmatprep.subr.bf16.mxu0 0
    %356 = vmatpush1.bf16.msra.mxu0 %v263
    %357 = vmatprep.subr.bf16.mxu0 0
    %358 = vmatpush1.bf16.msra.mxu0 %v264
    %359 = vmatprep.subr.bf16.mxu0 0
    %360 = vmatpush1.bf16.msra.mxu0 %v265
    %361 = vmatprep.subr.bf16.mxu0 0
    %362 = vmatpush1.bf16.msra.mxu0 %v266
    %363 = vmatprep.subr.bf16.mxu0 0
    %364 = vmatpush1.bf16.msra.mxu0 %v267
    %365 = vmatprep.subr.bf16.mxu0 0
    %366 = vmatpush1.bf16.msra.mxu0 %v268
    %367 = vmatprep.subr.bf16.mxu0 0
    %368 = vmatpush1.bf16.msra.mxu0 %v269
    %369 = vmatprep.subr.bf16.mxu0 0
    %370 = vmatpush1.bf16.msra.mxu0 %v270
    %371 = vmatprep.subr.bf16.mxu0 0
    %372 = vmatpush1.bf16.msra.mxu0 %v271
    %373 = vmatprep.subr.bf16.mxu0 0
    %374 = vmatpush1.bf16.msra.mxu0 %v272
    %375 = vmatprep.subr.bf16.mxu0 0
    %376 = vmatpush1.bf16.msra.mxu0 %v273
    %377 = vmatprep.subr.bf16.mxu0 0
    %378 = vmatpush1.bf16.msra.mxu0 %v274
    %379 = vmatprep.mubr.bf16.mxu0 %v110
    %380 = vmatmul.mubr.bf16.gmra.mrb[0].mxu0 %v109
    %v381 = vpop.f32.mrb[0].mxu0
    %v382 = vadd.f32 %v342, %v381
    %v383 = vpop.f32.mrb[0].mxu0
    %v384 = vpop.f32.mrb[0].mxu0
    %v385 = vpop.f32.mrb[0].mxu0
    %386 = vdwg.mxu0
    %v387 = vmax.f32 %v382, 0.0
    %v388 = vpack.c.bf16 %v387, %v387
    %v389 = vld [vmem:[%s3] sm:$0xff]
    %v390 = vld [vmem:[%s3 + $0x8] sm:$0xff]
    %v391 = vld [vmem:[%s3 + $0x10] sm:$0xff]
    %v392 = vld [vmem:[%s3 + $0x18] sm:$0xff]
    %v393 = vld [vmem:[%s3 + $0x20] sm:$0xff]
    %v394 = vld [vmem:[%s3 + $0x28] sm:$0xff]
    %v395 = vld [vmem:[%s3 + $0x30] sm:$0xff]
    %v396 = vld [vmem:[%s3 + $0x38] sm:$0xff]
    %v397 = vld [vmem:[%s3 + $0x40] sm:$0xff]
    %v398 = vld [vmem:[%s3 + $0x48] sm:$0xff]
    %v399 = vld [vmem:[%s3 + $0x50] sm:$0xff]
    %v400 = vld [vmem:[%s3 + $0x58] sm:$0xff]
    %v401 = vld [vmem:[%s3 + $0x60] sm:$0xff]
    %v402 = vld [vmem:[%s3 + $0x68] sm:$0xff]
    %v403 = vld [vmem:[%s3 + $0x70] sm:$0xff]
    %v404 = vld [vmem:[%s3 + $0x78] sm:$0xff]
    %v405 = vld [vmem:[%s3 + $0x80] sm:$0xff]
    %v406 = vld [vmem:[%s3 + $0x88] sm:$0xff]
    %v407 = vld [vmem:[%s3 + $0x90] sm:$0xff]
    %v408 = vld [vmem:[%s3 + $0x98] sm:$0xff]
    %v409 = vld [vmem:[%s3 + $0xa0] sm:$0xff]
    %v410 = vld [vmem:[%s3 + $0xa8] sm:$0xff]
    %v411 = vld [vmem:[%s3 + $0xb0] sm:$0xff]
    %v412 = vld [vmem:[%s3 + $0xb8] sm:$0xff]
    %v413 = vld [vmem:[%s3 + $0xc0] sm:$0xff]
    %v414 = vld [vmem:[%s3 + $0xc8] sm:$0xff]
    %v415 = vld [vmem:[%s3 + $0xd0] sm:$0xff]
    %v416 = vld [vmem:[%s3 + $0xd8] sm:$0xff]
    %v417 = vld [vmem:[%s3 + $0xe0] sm:$0xff]
    %v418 = vld [vmem:[%s3 + $0xe8] sm:$0xff]
    %v419 = vld [vmem:[%s3 + $0xf0] sm:$0xff]
    %v420 = vld [vmem:[%s3 + $0xf8] sm:$0xff]
    %s421 = scalar_lea.vmem %s3, 256
    %v422 = vld [vmem:[%s421] sm:$0xff]
    %v423 = vld [vmem:[%s421 + $0x8] sm:$0xff]
    %v424 = vld [vmem:[%s421 + $0x10] sm:$0xff]
    %v425 = vld [vmem:[%s421 + $0x18] sm:$0xff]
    %v426 = vld [vmem:[%s421 + $0x20] sm:$0xff]
    %v427 = vld [vmem:[%s421 + $0x28] sm:$0xff]
    %v428 = vld [vmem:[%s421 + $0x30] sm:$0xff]
    %v429 = vld [vmem:[%s421 + $0x38] sm:$0xff]
    %v430 = vld [vmem:[%s421 + $0x40] sm:$0xff]
    %v431 = vld [vmem:[%s421 + $0x48] sm:$0xff]
    %v432 = vld [vmem:[%s421 + $0x50] sm:$0xff]
    %v433 = vld [vmem:[%s421 + $0x58] sm:$0xff]
    %v434 = vld [vmem:[%s421 + $0x60] sm:$0xff]
    %v435 = vld [vmem:[%s421 + $0x68] sm:$0xff]
    %v436 = vld [vmem:[%s421 + $0x70] sm:$0xff]
    %v437 = vld [vmem:[%s421 + $0x78] sm:$0xff]
    %v438 = vld [vmem:[%s421 + $0x80] sm:$0xff]
    %v439 = vld [vmem:[%s421 + $0x88] sm:$0xff]
    %v440 = vld [vmem:[%s421 + $0x90] sm:$0xff]
    %v441 = vld [vmem:[%s421 + $0x98] sm:$0xff]
    %v442 = vld [vmem:[%s421 + $0xa0] sm:$0xff]
    %v443 = vld [vmem:[%s421 + $0xa8] sm:$0xff]
    %v444 = vld [vmem:[%s421 + $0xb0] sm:$0xff]
    %v445 = vld [vmem:[%s421 + $0xb8] sm:$0xff]
    %v446 = vld [vmem:[%s421 + $0xc0] sm:$0xff]
    %v447 = vld [vmem:[%s421 + $0xc8] sm:$0xff]
    %v448 = vld [vmem:[%s421 + $0xd0] sm:$0xff]
    %v449 = vld [vmem:[%s421 + $0xd8] sm:$0xff]
    %v450 = vld [vmem:[%s421 + $0xe0] sm:$0xff]
    %v451 = vld [vmem:[%s421 + $0xe8] sm:$0xff]
    %v452 = vld [vmem:[%s421 + $0xf0] sm:$0xff]
    %v453 = vld [vmem:[%s421 + $0xf8] sm:$0xff]
    %v455 = vrot.slane %v388, 1
    %v489 = vunpack.c.l.b16 %v422
    %v490 = vunpack.c.h.b16 %v422
    %v491 = vunpack.c.l.b16 %v423
    %v492 = vunpack.c.h.b16 %v423
    %v493 = vunpack.c.l.b16 %v424
    %v494 = vunpack.c.h.b16 %v424
    %v495 = vunpack.c.l.b16 %v425
    %v496 = vunpack.c.h.b16 %v425
    %v497 = vunpack.c.l.b16 %v426
    %v498 = vunpack.c.h.b16 %v426
    %v499 = vunpack.c.l.b16 %v427
    %v500 = vunpack.c.h.b16 %v427
    %v501 = vunpack.c.l.b16 %v428
    %v502 = vunpack.c.h.b16 %v428
    %v503 = vunpack.c.l.b16 %v429
    %v504 = vunpack.c.h.b16 %v429
    %v505 = vunpack.c.l.b16 %v430
    %v506 = vunpack.c.h.b16 %v430
    %v507 = vunpack.c.l.b16 %v431
    %v508 = vunpack.c.h.b16 %v431
    %v509 = vunpack.c.l.b16 %v432
    %v510 = vunpack.c.h.b16 %v432
    %v511 = vunpack.c.l.b16 %v433
    %v512 = vunpack.c.h.b16 %v433
    %v513 = vunpack.c.l.b16 %v434
    %v514 = vunpack.c.h.b16 %v434
    %v515 = vunpack.c.l.b16 %v435
    %v516 = vunpack.c.h.b16 %v435
    %v517 = vunpack.c.l.b16 %v436
    %v518 = vunpack.c.h.b16 %v436
    %v519 = vunpack.c.l.b16 %v437
    %v520 = vunpack.c.h.b16 %v437
    %v521 = vunpack.c.l.b16 %v438
    %v522 = vunpack.c.h.b16 %v438
    %v523 = vunpack.c.l.b16 %v439
    %v524 = vunpack.c.h.b16 %v439
    %v525 = vunpack.c.l.b16 %v440
    %v526 = vunpack.c.h.b16 %v440
    %v527 = vunpack.c.l.b16 %v441
    %v528 = vunpack.c.h.b16 %v441
    %v529 = vunpack.c.l.b16 %v442
    %v530 = vunpack.c.h.b16 %v442
    %v531 = vunpack.c.l.b16 %v443
    %v532 = vunpack.c.h.b16 %v443
    %v533 = vunpack.c.l.b16 %v444
    %v534 = vunpack.c.h.b16 %v444
    %v535 = vunpack.c.l.b16 %v445
    %v536 = vunpack.c.h.b16 %v445
    %v537 = vunpack.c.l.b16 %v446
    %v538 = vunpack.c.h.b16 %v446
    %v539 = vunpack.c.l.b16 %v447
    %v540 = vunpack.c.h.b16 %v447
    %v541 = vunpack.c.l.b16 %v448
    %v542 = vunpack.c.h.b16 %v448
    %v543 = vunpack.c.l.b16 %v449
    %v544 = vunpack.c.h.b16 %v449
    %v545 = vunpack.c.l.b16 %v450
    %v546 = vunpack.c.h.b16 %v450
    %v547 = vunpack.c.l.b16 %v451
    %v548 = vunpack.c.h.b16 %v451
    %v549 = vunpack.c.l.b16 %v452
    %v550 = vunpack.c.h.b16 %v452
    %v551 = vunpack.c.l.b16 %v453
    %v552 = vunpack.c.h.b16 %v453
    %v553 = vpack.c.b16 %v493, %v489
    %v554 = vpack.c.b16 %v494, %v490
    %v555 = vpack.c.b16 %v495, %v491
    %v556 = vpack.c.b16 %v496, %v492
    %v557 = vpack.c.b16 %v501, %v497
    %v558 = vpack.c.b16 %v502, %v498
    %v559 = vpack.c.b16 %v503, %v499
    %v560 = vpack.c.b16 %v504, %v500
    %v561 = vpack.c.b16 %v509, %v505
    %v562 = vpack.c.b16 %v510, %v506
    %v563 = vpack.c.b16 %v511, %v507
    %v564 = vpack.c.b16 %v512, %v508
    %v565 = vpack.c.b16 %v517, %v513
    %v566 = vpack.c.b16 %v518, %v514
    %v567 = vpack.c.b16 %v519, %v515
    %v568 = vpack.c.b16 %v520, %v516
    %v569 = vpack.c.b16 %v525, %v521
    %v570 = vpack.c.b16 %v526, %v522
    %v571 = vpack.c.b16 %v527, %v523
    %v572 = vpack.c.b16 %v528, %v524
    %v573 = vpack.c.b16 %v533, %v529
    %v574 = vpack.c.b16 %v534, %v530
    %v575 = vpack.c.b16 %v535, %v531
    %v576 = vpack.c.b16 %v536, %v532
    %v577 = vpack.c.b16 %v541, %v537
    %v578 = vpack.c.b16 %v542, %v538
    %v579 = vpack.c.b16 %v543, %v539
    %v580 = vpack.c.b16 %v544, %v540
    %v581 = vpack.c.b16 %v549, %v545
    %v582 = vpack.c.b16 %v550, %v546
    %v583 = vpack.c.b16 %v551, %v547
    %v584 = vpack.c.b16 %v552, %v548
    %617 = vmatprep.subr.bf16.mxu0 %v554
    %618 = vmatpush1.bf16.msra.mxu0 %v553
    %619 = vmatprep.subr.bf16.mxu0 %v558
    %620 = vmatpush1.bf16.msra.mxu0 %v557
    %621 = vmatprep.subr.bf16.mxu0 %v562
    %622 = vmatpush1.bf16.msra.mxu0 %v561
    %623 = vmatprep.subr.bf16.mxu0 %v566
    %624 = vmatpush1.bf16.msra.mxu0 %v565
    %625 = vmatprep.subr.bf16.mxu0 %v570
    %626 = vmatpush1.bf16.msra.mxu0 %v569
    %627 = vmatprep.subr.bf16.mxu0 %v574
    %628 = vmatpush1.bf16.msra.mxu0 %v573
    %629 = vmatprep.subr.bf16.mxu0 %v578
    %630 = vmatpush1.bf16.msra.mxu0 %v577
    %631 = vmatprep.subr.bf16.mxu0 %v582
    %632 = vmatpush1.bf16.msra.mxu0 %v581
    %633 = vmatprep.subr.bf16.mxu0 0
    %634 = vmatpush1.bf16.msra.mxu0 0
    %635 = vmatprep.subr.bf16.mxu0 0
    %636 = vmatpush1.bf16.msra.mxu0 0
    %637 = vmatprep.subr.bf16.mxu0 0
    %638 = vmatpush1.bf16.msra.mxu0 0
    %639 = vmatprep.subr.bf16.mxu0 0
    %640 = vmatpush1.bf16.msra.mxu0 0
    %641 = vmatprep.subr.bf16.mxu0 0
    %642 = vmatpush1.bf16.msra.mxu0 0
    %643 = vmatprep.subr.bf16.mxu0 0
    %644 = vmatpush1.bf16.msra.mxu0 0
    %645 = vmatprep.subr.bf16.mxu0 0
    %646 = vmatpush1.bf16.msra.mxu0 0
    %647 = vmatprep.subr.bf16.mxu0 0
    %648 = vmatpush1.bf16.msra.mxu0 0
    %649 = vmatprep.mubr.bf16.mxu0 0
    %650 = vmatmul.mubr.bf16.gmra.mrb[0].mxu0 %v455
    %v651 = vpop.f32.mrb[0].mxu0
    %v652 = vadd.f32 0.0, %v651
    %v653 = vpop.f32.mrb[0].mxu0
    %v654 = vadd.f32 0.0, %v653
    %v655 = vpop.f32.mrb[0].mxu0
    %v656 = vpop.f32.mrb[0].mxu0
    %657 = vdwg.mxu0
    %658 = vmatprep.subr.bf16.mxu0 %v556
    %659 = vmatpush1.bf16.msra.mxu0 %v555
    %660 = vmatprep.subr.bf16.mxu0 %v560
    %661 = vmatpush1.bf16.msra.mxu0 %v559
    %662 = vmatprep.subr.bf16.mxu0 %v564
    %663 = vmatpush1.bf16.msra.mxu0 %v563
    %664 = vmatprep.subr.bf16.mxu0 %v568
    %665 = vmatpush1.bf16.msra.mxu0 %v567
    %666 = vmatprep.subr.bf16.mxu0 %v572
    %667 = vmatpush1.bf16.msra.mxu0 %v571
    %668 = vmatprep.subr.bf16.mxu0 %v576
    %669 = vmatpush1.bf16.msra.mxu0 %v575
    %670 = vmatprep.subr.bf16.mxu0 %v580
    %671 = vmatpush1.bf16.msra.mxu0 %v579
    %672 = vmatprep.subr.bf16.mxu0 %v584
    %673 = vmatpush1.bf16.msra.mxu0 %v583
    %674 = vmatprep.subr.bf16.mxu0 0
    %675 = vmatpush1.bf16.msra.mxu0 0
    %676 = vmatprep.subr.bf16.mxu0 0
    %677 = vmatpush1.bf16.msra.mxu0 0
    %678 = vmatprep.subr.bf16.mxu0 0
    %679 = vmatpush1.bf16.msra.mxu0 0
    %680 = vmatprep.subr.bf16.mxu0 0
    %681 = vmatpush1.bf16.msra.mxu0 0
    %682 = vmatprep.subr.bf16.mxu0 0
    %683 = vmatpush1.bf16.msra.mxu0 0
    %684 = vmatprep.subr.bf16.mxu0 0
    %685 = vmatpush1.bf16.msra.mxu0 0
    %686 = vmatprep.subr.bf16.mxu0 0
    %687 = vmatpush1.bf16.msra.mxu0 0
    %688 = vmatprep.subr.bf16.mxu0 0
    %689 = vmatpush1.bf16.msra.mxu0 0
    %690 = vmatprep.mubr.bf16.mxu0 0
    %691 = vmatmul.mubr.bf16.gmra.mrb[0].mxu0 %v455
    %v692 = vpop.f32.mrb[0].mxu0
    %v693 = vadd.f32 0.0, %v692
    %v694 = vpop.f32.mrb[0].mxu0
    %v695 = vadd.f32 0.0, %v694
    %v696 = vpop.f32.mrb[0].mxu0
    %v697 = vpop.f32.mrb[0].mxu0
    %698 = vdwg.mxu0
    %v731 = vunpack.c.l.b16 %v389
    %v732 = vunpack.c.h.b16 %v389
    %v733 = vunpack.c.l.b16 %v390
    %v734 = vunpack.c.h.b16 %v390
    %v735 = vunpack.c.l.b16 %v391
    %v736 = vunpack.c.h.b16 %v391
    %v737 = vunpack.c.l.b16 %v392
    %v738 = vunpack.c.h.b16 %v392
    %v739 = vunpack.c.l.b16 %v393
    %v740 = vunpack.c.h.b16 %v393
    %v741 = vunpack.c.l.b16 %v394
    %v742 = vunpack.c.h.b16 %v394
    %v743 = vunpack.c.l.b16 %v395
    %v744 = vunpack.c.h.b16 %v395
    %v745 = vunpack.c.l.b16 %v396
    %v746 = vunpack.c.h.b16 %v396
    %v747 = vunpack.c.l.b16 %v397
    %v748 = vunpack.c.h.b16 %v397
    %v749 = vunpack.c.l.b16 %v398
    %v750 = vunpack.c.h.b16 %v398
    %v751 = vunpack.c.l.b16 %v399
    %v752 = vunpack.c.h.b16 %v399
    %v753 = vunpack.c.l.b16 %v400
    %v754 = vunpack.c.h.b16 %v400
    %v755 = vunpack.c.l.b16 %v401
    %v756 = vunpack.c.h.b16 %v401
    %v757 = vunpack.c.l.b16 %v402
    %v758 = vunpack.c.h.b16 %v402
    %v759 = vunpack.c.l.b16 %v403
    %v760 = vunpack.c.h.b16 %v403
    %v761 = vunpack.c.l.b16 %v404
    %v762 = vunpack.c.h.b16 %v404
    %v763 = vunpack.c.l.b16 %v405
    %v764 = vunpack.c.h.b16 %v405
    %v765 = vunpack.c.l.b16 %v406
    %v766 = vunpack.c.h.b16 %v406
    %v767 = vunpack.c.l.b16 %v407
    %v768 = vunpack.c.h.b16 %v407
    %v769 = vunpack.c.l.b16 %v408
    %v770 = vunpack.c.h.b16 %v408
    %v771 = vunpack.c.l.b16 %v409
    %v772 = vunpack.c.h.b16 %v409
    %v773 = vunpack.c.l.b16 %v410
    %v774 = vunpack.c.h.b16 %v410
    %v775 = vunpack.c.l.b16 %v411
    %v776 = vunpack.c.h.b16 %v411
    %v777 = vunpack.c.l.b16 %v412
    %v778 = vunpack.c.h.b16 %v412
    %v779 = vunpack.c.l.b16 %v413
    %v780 = vunpack.c.h.b16 %v413
    %v781 = vunpack.c.l.b16 %v414
    %v782 = vunpack.c.h.b16 %v414
    %v783 = vunpack.c.l.b16 %v415
    %v784 = vunpack.c.h.b16 %v415
    %v785 = vunpack.c.l.b16 %v416
    %v786 = vunpack.c.h.b16 %v416
    %v787 = vunpack.c.l.b16 %v417
    %v788 = vunpack.c.h.b16 %v417
    %v789 = vunpack.c.l.b16 %v418
    %v790 = vunpack.c.h.b16 %v418
    %v791 = vunpack.c.l.b16 %v419
    %v792 = vunpack.c.h.b16 %v419
    %v793 = vunpack.c.l.b16 %v420
    %v794 = vunpack.c.h.b16 %v420
    %v795 = vpack.c.b16 %v735, %v731
    %v796 = vpack.c.b16 %v736, %v732
    %v797 = vpack.c.b16 %v737, %v733
    %v798 = vpack.c.b16 %v738, %v734
    %v799 = vpack.c.b16 %v743, %v739
    %v800 = vpack.c.b16 %v744, %v740
    %v801 = vpack.c.b16 %v745, %v741
    %v802 = vpack.c.b16 %v746, %v742
    %v803 = vpack.c.b16 %v751, %v747
    %v804 = vpack.c.b16 %v752, %v748
    %v805 = vpack.c.b16 %v753, %v749
    %v806 = vpack.c.b16 %v754, %v750
    %v807 = vpack.c.b16 %v759, %v755
    %v808 = vpack.c.b16 %v760, %v756
    %v809 = vpack.c.b16 %v761, %v757
    %v810 = vpack.c.b16 %v762, %v758
    %v811 = vpack.c.b16 %v767, %v763
    %v812 = vpack.c.b16 %v768, %v764
    %v813 = vpack.c.b16 %v769, %v765
    %v814 = vpack.c.b16 %v770, %v766
    %v815 = vpack.c.b16 %v775, %v771
    %v816 = vpack.c.b16 %v776, %v772
    %v817 = vpack.c.b16 %v777, %v773
    %v818 = vpack.c.b16 %v778, %v774
    %v819 = vpack.c.b16 %v783, %v779
    %v820 = vpack.c.b16 %v784, %v780
    %v821 = vpack.c.b16 %v785, %v781
    %v822 = vpack.c.b16 %v786, %v782
    %v823 = vpack.c.b16 %v791, %v787
    %v824 = vpack.c.b16 %v792, %v788
    %v825 = vpack.c.b16 %v793, %v789
    %v826 = vpack.c.b16 %v794, %v790
    %859 = vmatprep.subr.bf16.mxu0 %v796
    %860 = vmatpush1.bf16.msra.mxu0 %v795
    %861 = vmatprep.subr.bf16.mxu0 %v800
    %862 = vmatpush1.bf16.msra.mxu0 %v799
    %863 = vmatprep.subr.bf16.mxu0 %v804
    %864 = vmatpush1.bf16.msra.mxu0 %v803
    %865 = vmatprep.subr.bf16.mxu0 %v808
    %866 = vmatpush1.bf16.msra.mxu0 %v807
    %867 = vmatprep.subr.bf16.mxu0 %v812
    %868 = vmatpush1.bf16.msra.mxu0 %v811
    %869 = vmatprep.subr.bf16.mxu0 %v816
    %870 = vmatpush1.bf16.msra.mxu0 %v815
    %871 = vmatprep.subr.bf16.mxu0 %v820
    %872 = vmatpush1.bf16.msra.mxu0 %v819
    %873 = vmatprep.subr.bf16.mxu0 %v824
    %874 = vmatpush1.bf16.msra.mxu0 %v823
    %875 = vmatprep.subr.bf16.mxu0 0
    %876 = vmatpush1.bf16.msra.mxu0 0
    %877 = vmatprep.subr.bf16.mxu0 0
    %878 = vmatpush1.bf16.msra.mxu0 0
    %879 = vmatprep.subr.bf16.mxu0 0
    %880 = vmatpush1.bf16.msra.mxu0 0
    %881 = vmatprep.subr.bf16.mxu0 0
    %882 = vmatpush1.bf16.msra.mxu0 0
    %883 = vmatprep.subr.bf16.mxu0 0
    %884 = vmatpush1.bf16.msra.mxu0 0
    %885 = vmatprep.subr.bf16.mxu0 0
    %886 = vmatpush1.bf16.msra.mxu0 0
    %887 = vmatprep.subr.bf16.mxu0 0
    %888 = vmatpush1.bf16.msra.mxu0 0
    %889 = vmatprep.subr.bf16.mxu0 0
    %890 = vmatpush1.bf16.msra.mxu0 0
    %891 = vmatprep.mubr.bf16.mxu0 0
    %892 = vmatmul.mubr.bf16.gmra.mrb[0].mxu0 %v388
    %v893 = vpop.f32.mrb[0].mxu0
    %v894 = vadd.f32 %v652, %v893
    %v895 = vpop.f32.mrb[0].mxu0
    %v896 = vadd.f32 %v654, %v895
    %v897 = vpop.f32.mrb[0].mxu0
    %v898 = vpop.f32.mrb[0].mxu0
    %899 = vdwg.mxu0
    %900 = vmatprep.subr.bf16.mxu0 %v798
    %901 = vmatpush1.bf16.msra.mxu0 %v797
    %902 = vmatprep.subr.bf16.mxu0 %v802
    %903 = vmatpush1.bf16.msra.mxu0 %v801
    %904 = vmatprep.subr.bf16.mxu0 %v806
    %905 = vmatpush1.bf16.msra.mxu0 %v805
    %906 = vmatprep.subr.bf16.mxu0 %v810
    %907 = vmatpush1.bf16.msra.mxu0 %v809
    %908 = vmatprep.subr.bf16.mxu0 %v814
    %909 = vmatpush1.bf16.msra.mxu0 %v813
    %910 = vmatprep.subr.bf16.mxu0 %v818
    %911 = vmatpush1.bf16.msra.mxu0 %v817
    %912 = vmatprep.subr.bf16.mxu0 %v822
    %913 = vmatpush1.bf16.msra.mxu0 %v821
    %914 = vmatprep.subr.bf16.mxu0 %v826
    %915 = vmatpush1.bf16.msra.mxu0 %v825
    %916 = vmatprep.subr.bf16.mxu0 0
    %917 = vmatpush1.bf16.msra.mxu0 0
    %918 = vmatprep.subr.bf16.mxu0 0
    %919 = vmatpush1.bf16.msra.mxu0 0
    %920 = vmatprep.subr.bf16.mxu0 0
    %921 = vmatpush1.bf16.msra.mxu0 0
    %922 = vmatprep.subr.bf16.mxu0 0
    %923 = vmatpush1.bf16.msra.mxu0 0
    %924 = vmatprep.subr.bf16.mxu0 0
    %925 = vmatpush1.bf16.msra.mxu0 0
    %926 = vmatprep.subr.bf16.mxu0 0
    %927 = vmatpush1.bf16.msra.mxu0 0
    %928 = vmatprep.subr.bf16.mxu0 0
    %929 = vmatpush1.bf16.msra.mxu0 0
    %930 = vmatprep.subr.bf16.mxu0 0
    %931 = vmatpush1.bf16.msra.mxu0 0
    %932 = vmatprep.mubr.bf16.mxu0 0
    %933 = vmatmul.mubr.bf16.gmra.mrb[0].mxu0 %v388
    %v934 = vpop.f32.mrb[0].mxu0
    %v935 = vadd.f32 %v693, %v934
    %v936 = vpop.f32.mrb[0].mxu0
    %v937 = vadd.f32 %v695, %v936
    %v938 = vpop.f32.mrb[0].mxu0
    %v939 = vpop.f32.mrb[0].mxu0
    %940 = vdwg.mxu0
    %s941 = scalar_lea.vmem %s3, 512
    %v942 = vld [vmem:[%s941] sm:$0xff]
    %v943 = vld [vmem:[%s941 + $0x8] sm:$0xff]
    %v944 = vld [vmem:[%s941 + $0x10] sm:$0xff]
    %v945 = vld [vmem:[%s941 + $0x18] sm:$0xff]
    %v946 = vld [vmem:[%s941 + $0x20] sm:$0xff]
    %v947 = vld [vmem:[%s941 + $0x28] sm:$0xff]
    %v948 = vld [vmem:[%s941 + $0x30] sm:$0xff]
    %v949 = vld [vmem:[%s941 + $0x38] sm:$0xff]
    %v950 = vld [vmem:[%s941 + $0x40] sm:$0xff]
    %v951 = vld [vmem:[%s941 + $0x48] sm:$0xff]
    %v952 = vld [vmem:[%s941 + $0x50] sm:$0xff]
    %v953 = vld [vmem:[%s941 + $0x58] sm:$0xff]
    %v954 = vld [vmem:[%s941 + $0x60] sm:$0xff]
    %v955 = vld [vmem:[%s941 + $0x68] sm:$0xff]
    %v956 = vld [vmem:[%s941 + $0x70] sm:$0xff]
    %v957 = vld [vmem:[%s941 + $0x78] sm:$0xff]
    %v958 = vld [vmem:[%s941 + $0x80] sm:$0xff]
    %v959 = vld [vmem:[%s941 + $0x88] sm:$0xff]
    %v960 = vld [vmem:[%s941 + $0x90] sm:$0xff]
    %v961 = vld [vmem:[%s941 + $0x98] sm:$0xff]
    %v962 = vld [vmem:[%s941 + $0xa0] sm:$0xff]
    %v963 = vld [vmem:[%s941 + $0xa8] sm:$0xff]
    %v964 = vld [vmem:[%s941 + $0xb0] sm:$0xff]
    %v965 = vld [vmem:[%s941 + $0xb8] sm:$0xff]
    %v966 = vld [vmem:[%s941 + $0xc0] sm:$0xff]
    %v967 = vld [vmem:[%s941 + $0xc8] sm:$0xff]
    %v968 = vld [vmem:[%s941 + $0xd0] sm:$0xff]
    %v969 = vld [vmem:[%s941 + $0xd8] sm:$0xff]
    %v970 = vld [vmem:[%s941 + $0xe0] sm:$0xff]
    %v971 = vld [vmem:[%s941 + $0xe8] sm:$0xff]
    %v972 = vld [vmem:[%s941 + $0xf0] sm:$0xff]
    %v973 = vld [vmem:[%s941 + $0xf8] sm:$0xff]
    %v974 = vrot.slane %v388, 2
    %v1008 = vunpack.c.l.b16 %v942
    %v1009 = vunpack.c.h.b16 %v942
    %v1010 = vunpack.c.l.b16 %v943
    %v1011 = vunpack.c.h.b16 %v943
    %v1012 = vunpack.c.l.b16 %v944
    %v1013 = vunpack.c.h.b16 %v944
    %v1014 = vunpack.c.l.b16 %v945
    %v1015 = vunpack.c.h.b16 %v945
    %v1016 = vunpack.c.l.b16 %v946
    %v1017 = vunpack.c.h.b16 %v946
    %v1018 = vunpack.c.l.b16 %v947
    %v1019 = vunpack.c.h.b16 %v947
    %v1020 = vunpack.c.l.b16 %v948
    %v1021 = vunpack.c.h.b16 %v948
    %v1022 = vunpack.c.l.b16 %v949
    %v1023 = vunpack.c.h.b16 %v949
    %v1024 = vunpack.c.l.b16 %v950
    %v1025 = vunpack.c.h.b16 %v950
    %v1026 = vunpack.c.l.b16 %v951
    %v1027 = vunpack.c.h.b16 %v951
    %v1028 = vunpack.c.l.b16 %v952
    %v1029 = vunpack.c.h.b16 %v952
    %v1030 = vunpack.c.l.b16 %v953
    %v1031 = vunpack.c.h.b16 %v953
    %v1032 = vunpack.c.l.b16 %v954
    %v1033 = vunpack.c.h.b16 %v954
    %v1034 = vunpack.c.l.b16 %v955
    %v1035 = vunpack.c.h.b16 %v955
    %v1036 = vunpack.c.l.b16 %v956
    %v1037 = vunpack.c.h.b16 %v956
    %v1038 = vunpack.c.l.b16 %v957
    %v1039 = vunpack.c.h.b16 %v957
    %v1040 = vunpack.c.l.b16 %v958
    %v1041 = vunpack.c.h.b16 %v958
    %v1042 = vunpack.c.l.b16 %v959
    %v1043 = vunpack.c.h.b16 %v959
    %v1044 = vunpack.c.l.b16 %v960
    %v1045 = vunpack.c.h.b16 %v960
    %v1046 = vunpack.c.l.b16 %v961
    %v1047 = vunpack.c.h.b16 %v961
    %v1048 = vunpack.c.l.b16 %v962
    %v1049 = vunpack.c.h.b16 %v962
    %v1050 = vunpack.c.l.b16 %v963
    %v1051 = vunpack.c.h.b16 %v963
    %v1052 = vunpack.c.l.b16 %v964
    %v1053 = vunpack.c.h.b16 %v964
    %v1054 = vunpack.c.l.b16 %v965
    %v1055 = vunpack.c.h.b16 %v965
    %v1056 = vunpack.c.l.b16 %v966
    %v1057 = vunpack.c.h.b16 %v966
    %v1058 = vunpack.c.l.b16 %v967
    %v1059 = vunpack.c.h.b16 %v967
    %v1060 = vunpack.c.l.b16 %v968
    %v1061 = vunpack.c.h.b16 %v968
    %v1062 = vunpack.c.l.b16 %v969
    %v1063 = vunpack.c.h.b16 %v969
    %v1064 = vunpack.c.l.b16 %v970
    %v1065 = vunpack.c.h.b16 %v970
    %v1066 = vunpack.c.l.b16 %v971
    %v1067 = vunpack.c.h.b16 %v971
    %v1068 = vunpack.c.l.b16 %v972
    %v1069 = vunpack.c.h.b16 %v972
    %v1070 = vunpack.c.l.b16 %v973
    %v1071 = vunpack.c.h.b16 %v973
    %v1072 = vpack.c.b16 %v1012, %v1008
    %v1073 = vpack.c.b16 %v1013, %v1009
    %v1074 = vpack.c.b16 %v1014, %v1010
    %v1075 = vpack.c.b16 %v1015, %v1011
    %v1076 = vpack.c.b16 %v1020, %v1016
    %v1077 = vpack.c.b16 %v1021, %v1017
    %v1078 = vpack.c.b16 %v1022, %v1018
    %v1079 = vpack.c.b16 %v1023, %v1019
    %v1080 = vpack.c.b16 %v1028, %v1024
    %v1081 = vpack.c.b16 %v1029, %v1025
    %v1082 = vpack.c.b16 %v1030, %v1026
    %v1083 = vpack.c.b16 %v1031, %v1027
    %v1084 = vpack.c.b16 %v1036, %v1032
    %v1085 = vpack.c.b16 %v1037, %v1033
    %v1086 = vpack.c.b16 %v1038, %v1034
    %v1087 = vpack.c.b16 %v1039, %v1035
    %v1088 = vpack.c.b16 %v1044, %v1040
    %v1089 = vpack.c.b16 %v1045, %v1041
    %v1090 = vpack.c.b16 %v1046, %v1042
    %v1091 = vpack.c.b16 %v1047, %v1043
    %v1092 = vpack.c.b16 %v1052, %v1048
    %v1093 = vpack.c.b16 %v1053, %v1049
    %v1094 = vpack.c.b16 %v1054, %v1050
    %v1095 = vpack.c.b16 %v1055, %v1051
    %v1096 = vpack.c.b16 %v1060, %v1056
    %v1097 = vpack.c.b16 %v1061, %v1057
    %v1098 = vpack.c.b16 %v1062, %v1058
    %v1099 = vpack.c.b16 %v1063, %v1059
    %v1100 = vpack.c.b16 %v1068, %v1064
    %v1101 = vpack.c.b16 %v1069, %v1065
    %v1102 = vpack.c.b16 %v1070, %v1066
    %v1103 = vpack.c.b16 %v1071, %v1067
    %1136 = vmatprep.subr.bf16.mxu0 %v1073
    %1137 = vmatpush1.bf16.msra.mxu0 %v1072
    %1138 = vmatprep.subr.bf16.mxu0 %v1077
    %1139 = vmatpush1.bf16.msra.mxu0 %v1076
    %1140 = vmatprep.subr.bf16.mxu0 %v1081
    %1141 = vmatpush1.bf16.msra.mxu0 %v1080
    %1142 = vmatprep.subr.bf16.mxu0 %v1085
    %1143 = vmatpush1.bf16.msra.mxu0 %v1084
    %1144 = vmatprep.subr.bf16.mxu0 %v1089
    %1145 = vmatpush1.bf16.msra.mxu0 %v1088
    %1146 = vmatprep.subr.bf16.mxu0 %v1093
    %1147 = vmatpush1.bf16.msra.mxu0 %v1092
    %1148 = vmatprep.subr.bf16.mxu0 %v1097
    %1149 = vmatpush1.bf16.msra.mxu0 %v1096
    %1150 = vmatprep.subr.bf16.mxu0 %v1101
    %1151 = vmatpush1.bf16.msra.mxu0 %v1100
    %1152 = vmatprep.subr.bf16.mxu0 0
    %1153 = vmatpush1.bf16.msra.mxu0 0
    %1154 = vmatprep.subr.bf16.mxu0 0
    %1155 = vmatpush1.bf16.msra.mxu0 0
    %1156 = vmatprep.subr.bf16.mxu0 0
    %1157 = vmatpush1.bf16.msra.mxu0 0
    %1158 = vmatprep.subr.bf16.mxu0 0
    %1159 = vmatpush1.bf16.msra.mxu0 0
    %1160 = vmatprep.subr.bf16.mxu0 0
    %1161 = vmatpush1.bf16.msra.mxu0 0
    %1162 = vmatprep.subr.bf16.mxu0 0
    %1163 = vmatpush1.bf16.msra.mxu0 0
    %1164 = vmatprep.subr.bf16.mxu0 0
    %1165 = vmatpush1.bf16.msra.mxu0 0
    %1166 = vmatprep.subr.bf16.mxu0 0
    %1167 = vmatpush1.bf16.msra.mxu0 0
    %1168 = vmatprep.mubr.bf16.mxu0 0
    %1169 = vmatmul.mubr.bf16.gmra.mrb[0].mxu0 %v974
    %v1170 = vpop.f32.mrb[0].mxu0
    %v1171 = vadd.f32 0.0, %v1170
    %v1172 = vpop.f32.mrb[0].mxu0
    %v1173 = vadd.f32 0.0, %v1172
    %v1174 = vpop.f32.mrb[0].mxu0
    %v1175 = vpop.f32.mrb[0].mxu0
    %1176 = vdwg.mxu0
    %1177 = vmatprep.subr.bf16.mxu0 %v1075
    %1178 = vmatpush1.bf16.msra.mxu0 %v1074
    %1179 = vmatprep.subr.bf16.mxu0 %v1079
    %1180 = vmatpush1.bf16.msra.mxu0 %v1078
    %1181 = vmatprep.subr.bf16.mxu0 %v1083
    %1182 = vmatpush1.bf16.msra.mxu0 %v1082
    %1183 = vmatprep.subr.bf16.mxu0 %v1087
    %1184 = vmatpush1.bf16.msra.mxu0 %v1086
    %1185 = vmatprep.subr.bf16.mxu0 %v1091
    %1186 = vmatpush1.bf16.msra.mxu0 %v1090
    %1187 = vmatprep.subr.bf16.mxu0 %v1095
    %1188 = vmatpush1.bf16.msra.mxu0 %v1094
    %1189 = vmatprep.subr.bf16.mxu0 %v1099
    %1190 = vmatpush1.bf16.msra.mxu0 %v1098
    %1191 = vmatprep.subr.bf16.mxu0 %v1103
    %1192 = vmatpush1.bf16.msra.mxu0 %v1102
    %1193 = vmatprep.subr.bf16.mxu0 0
    %1194 = vmatpush1.bf16.msra.mxu0 0
    %1195 = vmatprep.subr.bf16.mxu0 0
    %1196 = vmatpush1.bf16.msra.mxu0 0
    %1197 = vmatprep.subr.bf16.mxu0 0
    %1198 = vmatpush1.bf16.msra.mxu0 0
    %1199 = vmatprep.subr.bf16.mxu0 0
    %1200 = vmatpush1.bf16.msra.mxu0 0
    %1201 = vmatprep.subr.bf16.mxu0 0
    %1202 = vmatpush1.bf16.msra.mxu0 0
    %1203 = vmatprep.subr.bf16.mxu0 0
    %1204 = vmatpush1.bf16.msra.mxu0 0
    %1205 = vmatprep.subr.bf16.mxu0 0
    %1206 = vmatpush1.bf16.msra.mxu0 0
    %1207 = vmatprep.subr.bf16.mxu0 0
    %1208 = vmatpush1.bf16.msra.mxu0 0
    %1209 = vmatprep.mubr.bf16.mxu0 0
    %1210 = vmatmul.mubr.bf16.gmra.mrb[0].mxu0 %v974
    %v1211 = vpop.f32.mrb[0].mxu0
    %v1212 = vadd.f32 0.0, %v1211
    %v1213 = vpop.f32.mrb[0].mxu0
    %v1214 = vadd.f32 0.0, %v1213
    %v1215 = vpop.f32.mrb[0].mxu0
    %v1216 = vpop.f32.mrb[0].mxu0
    %1217 = vdwg.mxu0
    %v1218 = vadd.f32 %v894, %v1171
    %v1219 = vadd.f32 %v896, %v1173
    %v1220 = vadd.f32 %v935, %v1212
    %v1221 = vadd.f32 %v937, %v1214
    %s1222 = scalar_lea.vmem %s3, 768
    %v1223 = vld [vmem:[%s1222] sm:$0xff]
    %v1224 = vld [vmem:[%s1222 + $0x8] sm:$0xff]
    %v1225 = vld [vmem:[%s1222 + $0x10] sm:$0xff]
    %v1226 = vld [vmem:[%s1222 + $0x18] sm:$0xff]
    %v1227 = vld [vmem:[%s1222 + $0x20] sm:$0xff]
    %v1228 = vld [vmem:[%s1222 + $0x28] sm:$0xff]
    %v1229 = vld [vmem:[%s1222 + $0x30] sm:$0xff]
    %v1230 = vld [vmem:[%s1222 + $0x38] sm:$0xff]
    %v1231 = vld [vmem:[%s1222 + $0x40] sm:$0xff]
    %v1232 = vld [vmem:[%s1222 + $0x48] sm:$0xff]
    %v1233 = vld [vmem:[%s1222 + $0x50] sm:$0xff]
    %v1234 = vld [vmem:[%s1222 + $0x58] sm:$0xff]
    %v1235 = vld [vmem:[%s1222 + $0x60] sm:$0xff]
    %v1236 = vld [vmem:[%s1222 + $0x68] sm:$0xff]
    %v1237 = vld [vmem:[%s1222 + $0x70] sm:$0xff]
    %v1238 = vld [vmem:[%s1222 + $0x78] sm:$0xff]
    %v1239 = vld [vmem:[%s1222 + $0x80] sm:$0xff]
    %v1240 = vld [vmem:[%s1222 + $0x88] sm:$0xff]
    %v1241 = vld [vmem:[%s1222 + $0x90] sm:$0xff]
    %v1242 = vld [vmem:[%s1222 + $0x98] sm:$0xff]
    %v1243 = vld [vmem:[%s1222 + $0xa0] sm:$0xff]
    %v1244 = vld [vmem:[%s1222 + $0xa8] sm:$0xff]
    %v1245 = vld [vmem:[%s1222 + $0xb0] sm:$0xff]
    %v1246 = vld [vmem:[%s1222 + $0xb8] sm:$0xff]
    %v1247 = vld [vmem:[%s1222 + $0xc0] sm:$0xff]
    %v1248 = vld [vmem:[%s1222 + $0xc8] sm:$0xff]
    %v1249 = vld [vmem:[%s1222 + $0xd0] sm:$0xff]
    %v1250 = vld [vmem:[%s1222 + $0xd8] sm:$0xff]
    %v1251 = vld [vmem:[%s1222 + $0xe0] sm:$0xff]
    %v1252 = vld [vmem:[%s1222 + $0xe8] sm:$0xff]
    %v1253 = vld [vmem:[%s1222 + $0xf0] sm:$0xff]
    %v1254 = vld [vmem:[%s1222 + $0xf8] sm:$0xff]
    %v1255 = vrot.slane %v388, 3
    %v1289 = vunpack.c.l.b16 %v1223
    %v1290 = vunpack.c.h.b16 %v1223
    %v1291 = vunpack.c.l.b16 %v1224
    %v1292 = vunpack.c.h.b16 %v1224
    %v1293 = vunpack.c.l.b16 %v1225
    %v1294 = vunpack.c.h.b16 %v1225
    %v1295 = vunpack.c.l.b16 %v1226
    %v1296 = vunpack.c.h.b16 %v1226
    %v1297 = vunpack.c.l.b16 %v1227
    %v1298 = vunpack.c.h.b16 %v1227
    %v1299 = vunpack.c.l.b16 %v1228
    %v1300 = vunpack.c.h.b16 %v1228
    %v1301 = vunpack.c.l.b16 %v1229
    %v1302 = vunpack.c.h.b16 %v1229
    %v1303 = vunpack.c.l.b16 %v1230
    %v1304 = vunpack.c.h.b16 %v1230
    %v1305 = vunpack.c.l.b16 %v1231
    %v1306 = vunpack.c.h.b16 %v1231
    %v1307 = vunpack.c.l.b16 %v1232
    %v1308 = vunpack.c.h.b16 %v1232
    %v1309 = vunpack.c.l.b16 %v1233
    %v1310 = vunpack.c.h.b16 %v1233
    %v1311 = vunpack.c.l.b16 %v1234
    %v1312 = vunpack.c.h.b16 %v1234
    %v1313 = vunpack.c.l.b16 %v1235
    %v1314 = vunpack.c.h.b16 %v1235
    %v1315 = vunpack.c.l.b16 %v1236
    %v1316 = vunpack.c.h.b16 %v1236
    %v1317 = vunpack.c.l.b16 %v1237
    %v1318 = vunpack.c.h.b16 %v1237
    %v1319 = vunpack.c.l.b16 %v1238
    %v1320 = vunpack.c.h.b16 %v1238
    %v1321 = vunpack.c.l.b16 %v1239
    %v1322 = vunpack.c.h.b16 %v1239
    %v1323 = vunpack.c.l.b16 %v1240
    %v1324 = vunpack.c.h.b16 %v1240
    %v1325 = vunpack.c.l.b16 %v1241
    %v1326 = vunpack.c.h.b16 %v1241
    %v1327 = vunpack.c.l.b16 %v1242
    %v1328 = vunpack.c.h.b16 %v1242
    %v1329 = vunpack.c.l.b16 %v1243
    %v1330 = vunpack.c.h.b16 %v1243
    %v1331 = vunpack.c.l.b16 %v1244
    %v1332 = vunpack.c.h.b16 %v1244
    %v1333 = vunpack.c.l.b16 %v1245
    %v1334 = vunpack.c.h.b16 %v1245
    %v1335 = vunpack.c.l.b16 %v1246
    %v1336 = vunpack.c.h.b16 %v1246
    %v1337 = vunpack.c.l.b16 %v1247
    %v1338 = vunpack.c.h.b16 %v1247
    %v1339 = vunpack.c.l.b16 %v1248
    %v1340 = vunpack.c.h.b16 %v1248
    %v1341 = vunpack.c.l.b16 %v1249
    %v1342 = vunpack.c.h.b16 %v1249
    %v1343 = vunpack.c.l.b16 %v1250
    %v1344 = vunpack.c.h.b16 %v1250
    %v1345 = vunpack.c.l.b16 %v1251
    %v1346 = vunpack.c.h.b16 %v1251
    %v1347 = vunpack.c.l.b16 %v1252
    %v1348 = vunpack.c.h.b16 %v1252
    %v1349 = vunpack.c.l.b16 %v1253
    %v1350 = vunpack.c.h.b16 %v1253
    %v1351 = vunpack.c.l.b16 %v1254
    %v1352 = vunpack.c.h.b16 %v1254
    %v1353 = vpack.c.b16 %v1293, %v1289
    %v1354 = vpack.c.b16 %v1294, %v1290
    %v1355 = vpack.c.b16 %v1295, %v1291
    %v1356 = vpack.c.b16 %v1296, %v1292
    %v1357 = vpack.c.b16 %v1301, %v1297
    %v1358 = vpack.c.b16 %v1302, %v1298
    %v1359 = vpack.c.b16 %v1303, %v1299
    %v1360 = vpack.c.b16 %v1304, %v1300
    %v1361 = vpack.c.b16 %v1309, %v1305
    %v1362 = vpack.c.b16 %v1310, %v1306
    %v1363 = vpack.c.b16 %v1311, %v1307
    %v1364 = vpack.c.b16 %v1312, %v1308
    %v1365 = vpack.c.b16 %v1317, %v1313
    %v1366 = vpack.c.b16 %v1318, %v1314
    %v1367 = vpack.c.b16 %v1319, %v1315
    %v1368 = vpack.c.b16 %v1320, %v1316
    %v1369 = vpack.c.b16 %v1325, %v1321
    %v1370 = vpack.c.b16 %v1326, %v1322
    %v1371 = vpack.c.b16 %v1327, %v1323
    %v1372 = vpack.c.b16 %v1328, %v1324
    %v1373 = vpack.c.b16 %v1333, %v1329
    %v1374 = vpack.c.b16 %v1334, %v1330
    %v1375 = vpack.c.b16 %v1335, %v1331
    %v1376 = vpack.c.b16 %v1336, %v1332
    %v1377 = vpack.c.b16 %v1341, %v1337
    %v1378 = vpack.c.b16 %v1342, %v1338
    %v1379 = vpack.c.b16 %v1343, %v1339
    %v1380 = vpack.c.b16 %v1344, %v1340
    %v1381 = vpack.c.b16 %v1349, %v1345
    %v1382 = vpack.c.b16 %v1350, %v1346
    %v1383 = vpack.c.b16 %v1351, %v1347
    %v1384 = vpack.c.b16 %v1352, %v1348
    %1417 = vmatprep.subr.bf16.mxu0 %v1354
    %1418 = vmatpush1.bf16.msra.mxu0 %v1353
    %1419 = vmatprep.subr.bf16.mxu0 %v1358
    %1420 = vmatpush1.bf16.msra.mxu0 %v1357
    %1421 = vmatprep.subr.bf16.mxu0 %v1362
    %1422 = vmatpush1.bf16.msra.mxu0 %v1361
    %1423 = vmatprep.subr.bf16.mxu0 %v1366
    %1424 = vmatpush1.bf16.msra.mxu0 %v1365
    %1425 = vmatprep.subr.bf16.mxu0 %v1370
    %1426 = vmatpush1.bf16.msra.mxu0 %v1369
    %1427 = vmatprep.subr.bf16.mxu0 %v1374
    %1428 = vmatpush1.bf16.msra.mxu0 %v1373
    %1429 = vmatprep.subr.bf16.mxu0 %v1378
    %1430 = vmatpush1.bf16.msra.mxu0 %v1377
    %1431 = vmatprep.subr.bf16.mxu0 %v1382
    %1432 = vmatpush1.bf16.msra.mxu0 %v1381
    %1433 = vmatprep.subr.bf16.mxu0 0
    %1434 = vmatpush1.bf16.msra.mxu0 0
    %1435 = vmatprep.subr.bf16.mxu0 0
    %1436 = vmatpush1.bf16.msra.mxu0 0
    %1437 = vmatprep.subr.bf16.mxu0 0
    %1438 = vmatpush1.bf16.msra.mxu0 0
    %1439 = vmatprep.subr.bf16.mxu0 0
    %1440 = vmatpush1.bf16.msra.mxu0 0
    %1441 = vmatprep.subr.bf16.mxu0 0
    %1442 = vmatpush1.bf16.msra.mxu0 0
    %1443 = vmatprep.subr.bf16.mxu0 0
    %1444 = vmatpush1.bf16.msra.mxu0 0
    %1445 = vmatprep.subr.bf16.mxu0 0
    %1446 = vmatpush1.bf16.msra.mxu0 0
    %1447 = vmatprep.subr.bf16.mxu0 0
    %1448 = vmatpush1.bf16.msra.mxu0 0
    %1449 = vmatprep.mubr.bf16.mxu0 0
    %1450 = vmatmul.mubr.bf16.gmra.mrb[0].mxu0 %v1255
    %v1451 = vpop.f32.mrb[0].mxu0
    %v1452 = vadd.f32 0.0, %v1451
    %v1453 = vpop.f32.mrb[0].mxu0
    %v1454 = vadd.f32 0.0, %v1453
    %v1455 = vpop.f32.mrb[0].mxu0
    %v1456 = vpop.f32.mrb[0].mxu0
    %1457 = vdwg.mxu0
    %1458 = vmatprep.subr.bf16.mxu0 %v1356
    %1459 = vmatpush1.bf16.msra.mxu0 %v1355
    %1460 = vmatprep.subr.bf16.mxu0 %v1360
    %1461 = vmatpush1.bf16.msra.mxu0 %v1359
    %1462 = vmatprep.subr.bf16.mxu0 %v1364
    %1463 = vmatpush1.bf16.msra.mxu0 %v1363
    %1464 = vmatprep.subr.bf16.mxu0 %v1368
    %1465 = vmatpush1.bf16.msra.mxu0 %v1367
    %1466 = vmatprep.subr.bf16.mxu0 %v1372
    %1467 = vmatpush1.bf16.msra.mxu0 %v1371
    %1468 = vmatprep.subr.bf16.mxu0 %v1376
    %1469 = vmatpush1.bf16.msra.mxu0 %v1375
    %1470 = vmatprep.subr.bf16.mxu0 %v1380
    %1471 = vmatpush1.bf16.msra.mxu0 %v1379
    %1472 = vmatprep.subr.bf16.mxu0 %v1384
    %1473 = vmatpush1.bf16.msra.mxu0 %v1383
    %1474 = vmatprep.subr.bf16.mxu0 0
    %1475 = vmatpush1.bf16.msra.mxu0 0
    %1476 = vmatprep.subr.bf16.mxu0 0
    %1477 = vmatpush1.bf16.msra.mxu0 0
    %1478 = vmatprep.subr.bf16.mxu0 0
    %1479 = vmatpush1.bf16.msra.mxu0 0
    %1480 = vmatprep.subr.bf16.mxu0 0
    %1481 = vmatpush1.bf16.msra.mxu0 0
    %1482 = vmatprep.subr.bf16.mxu0 0
    %1483 = vmatpush1.bf16.msra.mxu0 0
    %1484 = vmatprep.subr.bf16.mxu0 0
    %1485 = vmatpush1.bf16.msra.mxu0 0
    %1486 = vmatprep.subr.bf16.mxu0 0
    %1487 = vmatpush1.bf16.msra.mxu0 0
    %1488 = vmatprep.subr.bf16.mxu0 0
    %1489 = vmatpush1.bf16.msra.mxu0 0
    %1490 = vmatprep.mubr.bf16.mxu0 0
    %1491 = vmatmul.mubr.bf16.gmra.mrb[0].mxu0 %v1255
    %v1492 = vpop.f32.mrb[0].mxu0
    %v1493 = vadd.f32 0.0, %v1492
    %v1494 = vpop.f32.mrb[0].mxu0
    %v1495 = vadd.f32 0.0, %v1494
    %v1496 = vpop.f32.mrb[0].mxu0
    %v1497 = vpop.f32.mrb[0].mxu0
    %1498 = vdwg.mxu0
    %v1499 = vadd.f32 %v1218, %v1452
    %v1500 = vadd.f32 %v1219, %v1454
    %v1501 = vadd.f32 %v1220, %v1493
    %v1502 = vadd.f32 %v1221, %v1495
    %v1503 = vld [vmem:[%s4] sm:$0xf]
    %v1505 = vlaneseq
    %v1506 = vshrl.u32 %v1505, 7
    %v1507 = vsub.s32 0, %v1506
    %v1508 = vrot.slane %v1503, %v1507
    %v1509 = vlaneseq
    %v1510 = vshrl.u32 %v1509, 7
    %v1511 = vsub.s32 1, %v1510
    %v1512 = vrot.slane %v1503, %v1511
    %v1513 = vlaneseq
    %v1514 = vshrl.u32 %v1513, 7
    %v1515 = vsub.s32 2, %v1514
    %v1516 = vrot.slane %v1503, %v1515
    %v1517 = vlaneseq
    %v1518 = vshrl.u32 %v1517, 7
    %v1519 = vsub.s32 3, %v1518
    %v1520 = vrot.slane %v1503, %v1519
    %v1525 = vadd.f32 %v1499, %v1508
    %v1526 = vadd.f32 %v1500, %v1512
    %v1527 = vadd.f32 %v1501, %v1516
    %v1528 = vadd.f32 %v1502, %v1520
    %v1529 = vmax.f32 %v1525, 0.0
    %v1530 = vmax.f32 %v1526, 0.0
    %v1531 = vmax.f32 %v1527, 0.0
    %v1532 = vmax.f32 %v1528, 0.0
    %v1533 = vpack.c.bf16 %v1529, %v1529
    %v1534 = vpack.c.bf16 %v1530, %v1530
    %v1535 = vpack.c.bf16 %v1531, %v1531
    %v1536 = vpack.c.bf16 %v1532, %v1532
    %v1537 = vld [vmem:[%s5] sm:$0xf]
    %v1538 = vld [vmem:[%s5 + $0x4] sm:$0xf]
    %v1539 = vld [vmem:[%s5 + $0x8] sm:$0xf]
    %v1540 = vld [vmem:[%s5 + $0xc] sm:$0xf]
    %v1541 = vld [vmem:[%s5 + $0x10] sm:$0xf]
    %v1542 = vld [vmem:[%s5 + $0x14] sm:$0xf]
    %v1543 = vld [vmem:[%s5 + $0x18] sm:$0xf]
    %v1544 = vld [vmem:[%s5 + $0x1c] sm:$0xf]
    %v1545 = vld [vmem:[%s5 + $0x20] sm:$0xf]
    %v1546 = vld [vmem:[%s5 + $0x24] sm:$0xf]
    %v1547 = vld [vmem:[%s5 + $0x28] sm:$0xf]
    %v1548 = vld [vmem:[%s5 + $0x2c] sm:$0xf]
    %v1549 = vld [vmem:[%s5 + $0x30] sm:$0xf]
    %v1550 = vld [vmem:[%s5 + $0x34] sm:$0xf]
    %v1551 = vld [vmem:[%s5 + $0x38] sm:$0xf]
    %v1552 = vld [vmem:[%s5 + $0x3c] sm:$0xf]
    %v1553 = vld [vmem:[%s5 + $0x40] sm:$0xf]
    %v1554 = vld [vmem:[%s5 + $0x44] sm:$0xf]
    %v1555 = vld [vmem:[%s5 + $0x48] sm:$0xf]
    %v1556 = vld [vmem:[%s5 + $0x4c] sm:$0xf]
    %v1557 = vld [vmem:[%s5 + $0x50] sm:$0xf]
    %v1558 = vld [vmem:[%s5 + $0x54] sm:$0xf]
    %v1559 = vld [vmem:[%s5 + $0x58] sm:$0xf]
    %v1560 = vld [vmem:[%s5 + $0x5c] sm:$0xf]
    %v1561 = vld [vmem:[%s5 + $0x60] sm:$0xf]
    %v1562 = vld [vmem:[%s5 + $0x64] sm:$0xf]
    %v1563 = vld [vmem:[%s5 + $0x68] sm:$0xf]
    %v1564 = vld [vmem:[%s5 + $0x6c] sm:$0xf]
    %v1565 = vld [vmem:[%s5 + $0x70] sm:$0xf]
    %v1566 = vld [vmem:[%s5 + $0x74] sm:$0xf]
    %v1567 = vld [vmem:[%s5 + $0x78] sm:$0xf]
    %v1568 = vld [vmem:[%s5 + $0x7c] sm:$0xf]
    %v1569 = vld [vmem:[%s5 + $0x80] sm:$0xf]
    %v1570 = vld [vmem:[%s5 + $0x84] sm:$0xf]
    %v1571 = vld [vmem:[%s5 + $0x88] sm:$0xf]
    %v1572 = vld [vmem:[%s5 + $0x8c] sm:$0xf]
    %v1573 = vld [vmem:[%s5 + $0x90] sm:$0xf]
    %v1574 = vld [vmem:[%s5 + $0x94] sm:$0xf]
    %v1575 = vld [vmem:[%s5 + $0x98] sm:$0xf]
    %v1576 = vld [vmem:[%s5 + $0x9c] sm:$0xf]
    %v1577 = vld [vmem:[%s5 + $0xa0] sm:$0xf]
    %v1578 = vld [vmem:[%s5 + $0xa4] sm:$0xf]
    %v1579 = vld [vmem:[%s5 + $0xa8] sm:$0xf]
    %v1580 = vld [vmem:[%s5 + $0xac] sm:$0xf]
    %v1581 = vld [vmem:[%s5 + $0xb0] sm:$0xf]
    %v1582 = vld [vmem:[%s5 + $0xb4] sm:$0xf]
    %v1583 = vld [vmem:[%s5 + $0xb8] sm:$0xf]
    %v1584 = vld [vmem:[%s5 + $0xbc] sm:$0xf]
    %v1585 = vld [vmem:[%s5 + $0xc0] sm:$0xf]
    %v1586 = vld [vmem:[%s5 + $0xc4] sm:$0xf]
    %v1587 = vld [vmem:[%s5 + $0xc8] sm:$0xf]
    %v1588 = vld [vmem:[%s5 + $0xcc] sm:$0xf]
    %v1589 = vld [vmem:[%s5 + $0xd0] sm:$0xf]
    %v1590 = vld [vmem:[%s5 + $0xd4] sm:$0xf]
    %v1591 = vld [vmem:[%s5 + $0xd8] sm:$0xf]
    %v1592 = vld [vmem:[%s5 + $0xdc] sm:$0xf]
    %v1593 = vld [vmem:[%s5 + $0xe0] sm:$0xf]
    %v1594 = vld [vmem:[%s5 + $0xe4] sm:$0xf]
    %v1595 = vld [vmem:[%s5 + $0xe8] sm:$0xf]
    %v1596 = vld [vmem:[%s5 + $0xec] sm:$0xf]
    %v1597 = vld [vmem:[%s5 + $0xf0] sm:$0xf]
    %v1598 = vld [vmem:[%s5 + $0xf4] sm:$0xf]
    %v1599 = vld [vmem:[%s5 + $0xf8] sm:$0xf]
    %v1600 = vld [vmem:[%s5 + $0xfc] sm:$0xf]
    %v1601 = vld [vmem:[%s6] sm:$0x1]
    %v1603 = vlaneseq
    %v1604 = vshrl.u32 %v1603, 7
    %v1605 = vsub.s32 0, %v1604
    %v1606 = vrot.slane %v1601, %v1605
    %v1672 = vunpack.c.l.b16 %v1537
    %v1673 = vunpack.c.l.b16 %v1538
    %v1674 = vunpack.c.l.b16 %v1539
    %v1675 = vunpack.c.l.b16 %v1540
    %v1676 = vunpack.c.l.b16 %v1541
    %v1677 = vunpack.c.l.b16 %v1542
    %v1678 = vunpack.c.l.b16 %v1543
    %v1679 = vunpack.c.l.b16 %v1544
    %v1680 = vunpack.c.l.b16 %v1545
    %v1681 = vunpack.c.l.b16 %v1546
    %v1682 = vunpack.c.l.b16 %v1547
    %v1683 = vunpack.c.l.b16 %v1548
    %v1684 = vunpack.c.l.b16 %v1549
    %v1685 = vunpack.c.l.b16 %v1550
    %v1686 = vunpack.c.l.b16 %v1551
    %v1687 = vunpack.c.l.b16 %v1552
    %v1688 = vunpack.c.l.b16 %v1553
    %v1689 = vunpack.c.l.b16 %v1554
    %v1690 = vunpack.c.l.b16 %v1555
    %v1691 = vunpack.c.l.b16 %v1556
    %v1692 = vunpack.c.l.b16 %v1557
    %v1693 = vunpack.c.l.b16 %v1558
    %v1694 = vunpack.c.l.b16 %v1559
    %v1695 = vunpack.c.l.b16 %v1560
    %v1696 = vunpack.c.l.b16 %v1561
    %v1697 = vunpack.c.l.b16 %v1562
    %v1698 = vunpack.c.l.b16 %v1563
    %v1699 = vunpack.c.l.b16 %v1564
    %v1700 = vunpack.c.l.b16 %v1565
    %v1701 = vunpack.c.l.b16 %v1566
    %v1702 = vunpack.c.l.b16 %v1567
    %v1703 = vunpack.c.l.b16 %v1568
    %v1704 = vunpack.c.l.b16 %v1569
    %v1705 = vunpack.c.l.b16 %v1570
    %v1706 = vunpack.c.l.b16 %v1571
    %v1707 = vunpack.c.l.b16 %v1572
    %v1708 = vunpack.c.l.b16 %v1573
    %v1709 = vunpack.c.l.b16 %v1574
    %v1710 = vunpack.c.l.b16 %v1575
    %v1711 = vunpack.c.l.b16 %v1576
    %v1712 = vunpack.c.l.b16 %v1577
    %v1713 = vunpack.c.l.b16 %v1578
    %v1714 = vunpack.c.l.b16 %v1579
    %v1715 = vunpack.c.l.b16 %v1580
    %v1716 = vunpack.c.l.b16 %v1581
    %v1717 = vunpack.c.l.b16 %v1582
    %v1718 = vunpack.c.l.b16 %v1583
    %v1719 = vunpack.c.l.b16 %v1584
    %v1720 = vunpack.c.l.b16 %v1585
    %v1721 = vunpack.c.l.b16 %v1586
    %v1722 = vunpack.c.l.b16 %v1587
    %v1723 = vunpack.c.l.b16 %v1588
    %v1724 = vunpack.c.l.b16 %v1589
    %v1725 = vunpack.c.l.b16 %v1590
    %v1726 = vunpack.c.l.b16 %v1591
    %v1727 = vunpack.c.l.b16 %v1592
    %v1728 = vunpack.c.l.b16 %v1593
    %v1729 = vunpack.c.l.b16 %v1594
    %v1730 = vunpack.c.l.b16 %v1595
    %v1731 = vunpack.c.l.b16 %v1596
    %v1732 = vunpack.c.l.b16 %v1597
    %v1733 = vunpack.c.l.b16 %v1598
    %v1734 = vunpack.c.l.b16 %v1599
    %v1735 = vunpack.c.l.b16 %v1600
    %v1736 = vpack.c.b16 %v1673, %v1672
    %v1737 = vpack.c.b16 %v1675, %v1674
    %v1738 = vpack.c.b16 %v1677, %v1676
    %v1739 = vpack.c.b16 %v1679, %v1678
    %v1740 = vpack.c.b16 %v1681, %v1680
    %v1741 = vpack.c.b16 %v1683, %v1682
    %v1742 = vpack.c.b16 %v1685, %v1684
    %v1743 = vpack.c.b16 %v1687, %v1686
    %v1744 = vpack.c.b16 %v1689, %v1688
    %v1745 = vpack.c.b16 %v1691, %v1690
    %v1746 = vpack.c.b16 %v1693, %v1692
    %v1747 = vpack.c.b16 %v1695, %v1694
    %v1748 = vpack.c.b16 %v1697, %v1696
    %v1749 = vpack.c.b16 %v1699, %v1698
    %v1750 = vpack.c.b16 %v1701, %v1700
    %v1751 = vpack.c.b16 %v1703, %v1702
    %v1752 = vpack.c.b16 %v1705, %v1704
    %v1753 = vpack.c.b16 %v1707, %v1706
    %v1754 = vpack.c.b16 %v1709, %v1708
    %v1755 = vpack.c.b16 %v1711, %v1710
    %v1756 = vpack.c.b16 %v1713, %v1712
    %v1757 = vpack.c.b16 %v1715, %v1714
    %v1758 = vpack.c.b16 %v1717, %v1716
    %v1759 = vpack.c.b16 %v1719, %v1718
    %v1760 = vpack.c.b16 %v1721, %v1720
    %v1761 = vpack.c.b16 %v1723, %v1722
    %v1762 = vpack.c.b16 %v1725, %v1724
    %v1763 = vpack.c.b16 %v1727, %v1726
    %v1764 = vpack.c.b16 %v1729, %v1728
    %v1765 = vpack.c.b16 %v1731, %v1730
    %v1766 = vpack.c.b16 %v1733, %v1732
    %v1767 = vpack.c.b16 %v1735, %v1734
    %1800 = vmatprep.subr.bf16.mxu0 0
    %1801 = vmatpush1.bf16.msra.mxu0 %v1736
    %1802 = vmatprep.subr.bf16.mxu0 0
    %1803 = vmatpush1.bf16.msra.mxu0 %v1737
    %1804 = vmatprep.subr.bf16.mxu0 0
    %1805 = vmatpush1.bf16.msra.mxu0 %v1738
    %1806 = vmatprep.subr.bf16.mxu0 0
    %1807 = vmatpush1.bf16.msra.mxu0 %v1739
    %1808 = vmatprep.subr.bf16.mxu0 0
    %1809 = vmatpush1.bf16.msra.mxu0 %v1740
    %1810 = vmatprep.subr.bf16.mxu0 0
    %1811 = vmatpush1.bf16.msra.mxu0 %v1741
    %1812 = vmatprep.subr.bf16.mxu0 0
    %1813 = vmatpush1.bf16.msra.mxu0 %v1742
    %1814 = vmatprep.subr.bf16.mxu0 0
    %1815 = vmatpush1.bf16.msra.mxu0 %v1743
    %1816 = vmatprep.subr.bf16.mxu0 0
    %1817 = vmatpush1.bf16.msra.mxu0 %v1744
    %1818 = vmatprep.subr.bf16.mxu0 0
    %1819 = vmatpush1.bf16.msra.mxu0 %v1745
    %1820 = vmatprep.subr.bf16.mxu0 0
    %1821 = vmatpush1.bf16.msra.mxu0 %v1746
    %1822 = vmatprep.subr.bf16.mxu0 0
    %1823 = vmatpush1.bf16.msra.mxu0 %v1747
    %1824 = vmatprep.subr.bf16.mxu0 0
    %1825 = vmatpush1.bf16.msra.mxu0 %v1748
    %1826 = vmatprep.subr.bf16.mxu0 0
    %1827 = vmatpush1.bf16.msra.mxu0 %v1749
    %1828 = vmatprep.subr.bf16.mxu0 0
    %1829 = vmatpush1.bf16.msra.mxu0 %v1750
    %1830 = vmatprep.subr.bf16.mxu0 0
    %1831 = vmatpush1.bf16.msra.mxu0 %v1751
    %1832 = vmatprep.mubr.bf16.mxu0 %v1534
    %1833 = vmatmul.mubr.bf16.gmra.mrb[0].mxu0 %v1533
    %v1834 = vpop.f32.mrb[0].mxu0
    %v1835 = vadd.f32 %v1606, %v1834
    %v1836 = vpop.f32.mrb[0].mxu0
    %v1837 = vpop.f32.mrb[0].mxu0
    %v1838 = vpop.f32.mrb[0].mxu0
    %1839 = vdwg.mxu0
    %1840 = vmatprep.subr.bf16.mxu0 0
    %1841 = vmatpush1.bf16.msra.mxu0 %v1752
    %1842 = vmatprep.subr.bf16.mxu0 0
    %1843 = vmatpush1.bf16.msra.mxu0 %v1753
    %1844 = vmatprep.subr.bf16.mxu0 0
    %1845 = vmatpush1.bf16.msra.mxu0 %v1754
    %1846 = vmatprep.subr.bf16.mxu0 0
    %1847 = vmatpush1.bf16.msra.mxu0 %v1755
    %1848 = vmatprep.subr.bf16.mxu0 0
    %1849 = vmatpush1.bf16.msra.mxu0 %v1756
    %1850 = vmatprep.subr.bf16.mxu0 0
    %1851 = vmatpush1.bf16.msra.mxu0 %v1757
    %1852 = vmatprep.subr.bf16.mxu0 0
    %1853 = vmatpush1.bf16.msra.mxu0 %v1758
    %1854 = vmatprep.subr.bf16.mxu0 0
    %1855 = vmatpush1.bf16.msra.mxu0 %v1759
    %1856 = vmatprep.subr.bf16.mxu0 0
    %1857 = vmatpush1.bf16.msra.mxu0 %v1760
    %1858 = vmatprep.subr.bf16.mxu0 0
    %1859 = vmatpush1.bf16.msra.mxu0 %v1761
    %1860 = vmatprep.subr.bf16.mxu0 0
    %1861 = vmatpush1.bf16.msra.mxu0 %v1762
    %1862 = vmatprep.subr.bf16.mxu0 0
    %1863 = vmatpush1.bf16.msra.mxu0 %v1763
    %1864 = vmatprep.subr.bf16.mxu0 0
    %1865 = vmatpush1.bf16.msra.mxu0 %v1764
    %1866 = vmatprep.subr.bf16.mxu0 0
    %1867 = vmatpush1.bf16.msra.mxu0 %v1765
    %1868 = vmatprep.subr.bf16.mxu0 0
    %1869 = vmatpush1.bf16.msra.mxu0 %v1766
    %1870 = vmatprep.subr.bf16.mxu0 0
    %1871 = vmatpush1.bf16.msra.mxu0 %v1767
    %1872 = vmatprep.mubr.bf16.mxu0 %v1536
    %1873 = vmatmul.mubr.bf16.gmra.mrb[0].mxu0 %v1535
    %v1874 = vpop.f32.mrb[0].mxu0
    %v1875 = vadd.f32 %v1835, %v1874
    %v1876 = vpop.f32.mrb[0].mxu0
    %v1877 = vpop.f32.mrb[0].mxu0
    %v1878 = vpop.f32.mrb[0].mxu0
    %1879 = vdwg.mxu0
    %v1880 = vlaneseq
    %v1881 = vand.u32 %v1880, 127
    %vm1882 = vcmp.lt.s32.totalorder %v1881, 4
    %v1883 = vsel %vm1882, %v1875, -1e+30
    %vm1884 = vcmask 1041408
    %v1885 = vsel %vm1884, %v1883, -inf
    %1886 = vmax.xlane.f32.xlu0 %v1885
    %v1887 = vpop.xlane.xlu0 %1886
    %v1888 = vsub.f32 %v1883, %v1887
    %v1889 = vmul.f32 %v1888, 1.442695
    %v1890 = vpow.pop %v1889
    %v1891 = vsel %vm1884, %v1890, 0.0
    %1892 = vadd.xlane.f32.xlu0 %v1891
    %v1893 = vpop.xlane.xlu0 %1892
    %v1894 = vrcp.pop %v1893
    %v1895 = vmul.f32 %v1890, %v1894
    %1896 = vst [vmem:[#allocation2] sm:$0x3] %v1895
    // Predicated region
    $region30: #{dqn_forward.3} parent=1 // pred_check
      _
    $region31: #{dqn_forward.3} parent=1 // pred_check_branch
      %1898 = sbr.rel (0) target = $region33
    $region32: #{dqn_forward.3} parent=1 // pred_region
      %s1900 = ssub.s32 32, 32
      %1901 = vsyncadd [#allocation3], %s1900
      %s1903 = sshll.u32 [#allocation2], 4
      %s1904 = int_to_ptr.vmem [resolvable:$true] %s1903
      %1906 = dma.vmem_to_hbm [thread:$0]  %s1904, 32, %s7, [#allocation3]
    $region33: #{dqn_forward.3} parent=1 // pred_fallthru
      _
    // Predicated region
    $region34: #{dqn_forward.3} parent=1 // pred_check
      _
    $region35: #{dqn_forward.3} parent=1 // pred_check_branch
      %1908 = sbr.rel (0) target = $region37
    $region36: #{dqn_forward.3} parent=1 // pred_region
      %1909 = dma.done [#allocation3], 32
    $region37: #{dqn_forward.3} parent=1 // pred_fallthru
      _
    %1910 = vsyncpa [#allocation3], 1

</llo_original>
